<compile_context>
chip_gen: v7x
topology: tpu7x:2x2x1
jax: 0.10.0
libtpu: 0.0.40
codegen_flags: <defaults>
</compile_context>

<pallas_src>
import functools

import jax
import jax.numpy as jnp
from jax.experimental import pallas as pl
from jax.experimental.pallas import tpu as pltpu


def _fused_gcn_kernel(adj_ref, mask_col_ref, mask_row_ref, feat_ref, *refs,
                      num_layers):
    """All GraphConv layers fused; runs once (grid=()) entirely out of VMEM.

    adj_ref:      (R, R)  block-diagonal adjacency, R = N*S, kron(A, I_S)
    mask_col_ref: (R, 1)  flattened mask (row index = n*S + s)
    mask_row_ref: (1, R)  same mask in row layout (for the VPU degree reduce)
    feat_ref:     (R, F_in)
    refs:         [w_agg_0, w_jump_0, b_0, ..., w_agg_{L-1}, w_jump_{L-1},
                   b_{L-1}, out_ref]
    """
    out_ref = refs[-1]
    adj = adj_ref[...]                                           # (R, R)
    m_col = mask_col_ref[...]                                    # (R, 1)
    m_row = mask_row_ref[...]                                    # (1, R)

    # Masked in-degree: VPU multiply + XLU lane reduce (keeps the MXU free).
    deg = jnp.sum(adj * m_row, axis=-1, keepdims=True)           # (R, 1)
    # rsqrt(0) = inf is computed but discarded by the select; safe because adj
    # and mask are exactly 0/1 so the compare deg == 0.0 is exact.
    norm = jnp.where(deg == 0.0, 1.0, jax.lax.rsqrt(deg))        # (R, 1)
    nm = norm * m_col                                            # (R, 1)

    x = feat_ref[...]                                            # (R, F_in)
    for i in range(num_layers):                                  # static unroll
        w_agg = refs[3 * i][...]                                 # (F, H)
        w_jump = refs[3 * i + 1][...]                            # (F, H)
        bias = refs[3 * i + 2][...]                              # (1, H)

        xs = x * nm                                              # (R, F)
        agg = jnp.dot(adj, xs,
                      preferred_element_type=jnp.float32) * norm  # (R, F)
        # cat([agg, x], -1) @ W + b  ==  agg @ W[:F] + x @ W[F:] + b
        out = (jnp.dot(agg, w_agg, preferred_element_type=jnp.float32)
               + jnp.dot(x, w_jump, preferred_element_type=jnp.float32)
               + bias)                                           # (R, H)
        if i < num_layers - 1:
            out = jnp.maximum(out, 0.0)
        x = out
    out_ref[...] = x


def policy_graph_conv_net(params, h, adj, mask):
    """h: (N, S, F) torch layout, mask: (N, S), adj: (N, N) with A[i,j]=1 iff
    edge j -> i.  Returns (N, S, out_dim)."""
    N, S, F = h.shape
    R = N * S
    out_dim = params[-1][0].shape[1]

    # Fold samples into the node axis (flat row index = n*S + s): only free
    # reshapes of the torch-layout tensors, and the adjacency is lifted to the
    # same flattened index space with a Kronecker product (done once by XLA).
    adj_bd = jnp.kron(adj.astype(jnp.float32),
                      jnp.eye(S, dtype=jnp.float32))             # (R, R)
    feat = h.astype(jnp.float32).reshape(R, F)
    mask_col = mask.astype(jnp.float32).reshape(R, 1)
    mask_row = mask.astype(jnp.float32).reshape(1, R)

    flat_params = []
    for w, b in params:
        f_in = w.shape[0] // 2
        flat_params += [w[:f_in], w[f_in:], b.reshape(1, -1)]

    vmem = pl.BlockSpec(memory_space=pltpu.MemorySpace.VMEM)
    out = pl.pallas_call(
        functools.partial(_fused_gcn_kernel, num_layers=len(params)),
        out_shape=jax.ShapeDtypeStruct((R, out_dim), jnp.float32),
        in_specs=[vmem] * (4 + len(flat_params)),
        out_specs=vmem,
    )(adj_bd, mask_col, mask_row, feat, *flat_params)
    return out.reshape(N, S, out_dim)
    # TODO(synk): the mask=None branch uses DGL in_degrees() and has ill-formed
    # broadcasting with jump=True in the original code; only the masked path is
    # implemented.


def init_params(key, input_dim, hidden_dim, output_dim, num_layers):
    """Deterministic xavier-uniform weights / zero biases, last bias[2] += 3."""
    dims = [input_dim] + [hidden_dim] * num_layers + [output_dim]
    params = []
    for i in range(len(dims) - 1):
        fin, fout = dims[i], dims[i + 1]
        key, sub = jax.random.split(key)
        # torch xavier_uniform on (2*fin, fout): bound = sqrt(6 / (2*fin + fout))
        bound = (6.0 / (2 * fin + fout)) ** 0.5
        w = jax.random.uniform(sub, (2 * fin, fout), jnp.float32, -bound, bound)
        b = jnp.zeros((fout,), jnp.float32)
        params.append((w, b))
    w_last, b_last = params[-1]
    params[-1] = (w_last, b_last.at[2].add(3.0))
    return params


if __name__ == "__main__":
    key = jax.random.PRNGKey(0)
    N, S = 16, 8                       # nodes, samples
    input_dim, hidden_dim, output_dim, num_layers = 4, 32, 3, 3

    k1, k2, k3, k4 = jax.random.split(key, 4)
    # deterministic undirected graph (symmetric dense adjacency, no self-loops)
    upper = jnp.triu((jax.random.uniform(k1, (N, N)) < 0.3).astype(jnp.float32), 1)
    adj = upper + upper.T

    h = jax.random.normal(k2, (N, S, input_dim), jnp.float32)
    mask = (jax.random.uniform(k3, (N, S)) < 0.7).astype(jnp.float32)

    params = init_params(k4, input_dim, hidden_dim, output_dim, num_layers)

    fwd = jax.jit(policy_graph_conv_net)
    out = fwd(params, h, adj, mask)
    out = jax.block_until_ready(out)
    assert out.shape == (N, S, output_dim)
    assert bool(jnp.all(jnp.isfinite(out)))
    print("KERNEL_OK")
</pallas_src>

<mosaic_0001>
module attributes {stable_mosaic.version = 11 : i64} {
  func.func @_fused_gcn_kernel(%arg0: memref<128x128xf32, #tpu.memory_space<vmem>>, %arg1: memref<128x1xf32, #tpu.memory_space<vmem>>, %arg2: memref<1x128xf32, #tpu.memory_space<vmem>>, %arg3: memref<128x4xf32, #tpu.memory_space<vmem>>, %arg4: memref<4x32xf32, #tpu.memory_space<vmem>>, %arg5: memref<4x32xf32, #tpu.memory_space<vmem>>, %arg6: memref<1x32xf32, #tpu.memory_space<vmem>>, %arg7: memref<32x32xf32, #tpu.memory_space<vmem>>, %arg8: memref<32x32xf32, #tpu.memory_space<vmem>>, %arg9: memref<1x32xf32, #tpu.memory_space<vmem>>, %arg10: memref<32x32xf32, #tpu.memory_space<vmem>>, %arg11: memref<32x32xf32, #tpu.memory_space<vmem>>, %arg12: memref<1x32xf32, #tpu.memory_space<vmem>>, %arg13: memref<32x3xf32, #tpu.memory_space<vmem>>, %arg14: memref<32x3xf32, #tpu.memory_space<vmem>>, %arg15: memref<1x3xf32, #tpu.memory_space<vmem>>, %arg16: memref<128x3xf32, #tpu.memory_space<vmem>>) attributes {dimension_semantics = [], scalar_prefetch = 0 : i64, scratch_operands = 0 : i64, tpu.core_type = #tpu.core_type<tc>} {
    %c0 = arith.constant 0 : index
    %c0_0 = arith.constant 0 : index
    %0 = vector.load %arg0[%c0, %c0_0] : memref<128x128xf32, #tpu.memory_space<vmem>>, vector<128x128xf32>
    %c0_1 = arith.constant 0 : index
    %c0_2 = arith.constant 0 : index
    %1 = vector.load %arg1[%c0_1, %c0_2] : memref<128x1xf32, #tpu.memory_space<vmem>>, vector<128x1xf32>
    %c0_3 = arith.constant 0 : index
    %c0_4 = arith.constant 0 : index
    %2 = vector.load %arg2[%c0_3, %c0_4] : memref<1x128xf32, #tpu.memory_space<vmem>>, vector<1x128xf32>
    %3 = vector.broadcast %2 : vector<1x128xf32> to vector<128x128xf32>
    %4 = arith.mulf %0, %3 : vector<128x128xf32>
    %cst = arith.constant dense<0.000000e+00> : vector<128xf32>
    %5 = vector.multi_reduction <add>, %4, %cst [1] : vector<128x128xf32> to vector<128xf32>
    %6 = vector.shape_cast %5 : vector<128xf32> to vector<128x1xf32>
    %cst_5 = arith.constant 0.000000e+00 : f32
    %7 = vector.broadcast %cst_5 : f32 to vector<128x1xf32>
    %8 = arith.cmpf oeq, %6, %7 : vector<128x1xf32>
    %9 = math.rsqrt %6 : vector<128x1xf32>
    %cst_6 = arith.constant 1.000000e+00 : f32
    %10 = vector.broadcast %cst_6 : f32 to vector<128x1xf32>
    %11 = arith.select %8, %10, %9 : vector<128x1xi1>, vector<128x1xf32>
    %12 = arith.mulf %11, %1 : vector<128x1xf32>
    %c0_7 = arith.constant 0 : index
    %c0_8 = arith.constant 0 : index
    %13 = vector.load %arg3[%c0_7, %c0_8] : memref<128x4xf32, #tpu.memory_space<vmem>>, vector<128x4xf32>
    %c0_9 = arith.constant 0 : index
    %c0_10 = arith.constant 0 : index
    %14 = vector.load %arg4[%c0_9, %c0_10] : memref<4x32xf32, #tpu.memory_space<vmem>>, vector<4x32xf32>
    %c0_11 = arith.constant 0 : index
    %c0_12 = arith.constant 0 : index
    %15 = vector.load %arg5[%c0_11, %c0_12] : memref<4x32xf32, #tpu.memory_space<vmem>>, vector<4x32xf32>
    %c0_13 = arith.constant 0 : index
    %c0_14 = arith.constant 0 : index
    %16 = vector.load %arg6[%c0_13, %c0_14] : memref<1x32xf32, #tpu.memory_space<vmem>>, vector<1x32xf32>
    %17 = vector.broadcast %12 : vector<128x1xf32> to vector<128x4xf32>
    %18 = arith.mulf %13, %17 : vector<128x4xf32>
    %cst_15 = arith.constant dense<0.000000e+00> : vector<128x4xf32>
    %19 = tpu.matmul %0, %18, %cst_15 {dimension_numbers = #tpu.dot_dimension_numbers<[1], [0], [0], [1], [0, 0, 1, 1], [], []>} : vector<128x128xf32>, vector<128x4xf32>, vector<128x4xf32> -> vector<128x4xf32>
    %20 = vector.broadcast %11 : vector<128x1xf32> to vector<128x4xf32>
    %21 = arith.mulf %19, %20 : vector<128x4xf32>
    %cst_16 = arith.constant dense<0.000000e+00> : vector<128x32xf32>
    %22 = tpu.matmul %21, %14, %cst_16 {dimension_numbers = #tpu.dot_dimension_numbers<[1], [0], [0], [1], [0, 0, 1, 1], [], []>} : vector<128x4xf32>, vector<4x32xf32>, vector<128x32xf32> -> vector<128x32xf32>
    %cst_17 = arith.constant dense<0.000000e+00> : vector<128x32xf32>
    %23 = tpu.matmul %13, %15, %cst_17 {dimension_numbers = #tpu.dot_dimension_numbers<[1], [0], [0], [1], [0, 0, 1, 1], [], []>} : vector<128x4xf32>, vector<4x32xf32>, vector<128x32xf32> -> vector<128x32xf32>
    %24 = arith.addf %22, %23 : vector<128x32xf32>
    %25 = vector.broadcast %16 : vector<1x32xf32> to vector<128x32xf32>
    %26 = arith.addf %24, %25 : vector<128x32xf32>
    %cst_18 = arith.constant 0.000000e+00 : f32
    %27 = vector.broadcast %cst_18 : f32 to vector<128x32xf32>
    %28 = arith.maximumf %26, %27 : vector<128x32xf32>
    %c0_19 = arith.constant 0 : index
    %c0_20 = arith.constant 0 : index
    %29 = vector.load %arg7[%c0_19, %c0_20] : memref<32x32xf32, #tpu.memory_space<vmem>>, vector<32x32xf32>
    %c0_21 = arith.constant 0 : index
    %c0_22 = arith.constant 0 : index
    %30 = vector.load %arg8[%c0_21, %c0_22] : memref<32x32xf32, #tpu.memory_space<vmem>>, vector<32x32xf32>
    %c0_23 = arith.constant 0 : index
    %c0_24 = arith.constant 0 : index
    %31 = vector.load %arg9[%c0_23, %c0_24] : memref<1x32xf32, #tpu.memory_space<vmem>>, vector<1x32xf32>
    %32 = vector.broadcast %12 : vector<128x1xf32> to vector<128x32xf32>
    %33 = arith.mulf %28, %32 : vector<128x32xf32>
    %cst_25 = arith.constant dense<0.000000e+00> : vector<128x32xf32>
    %34 = tpu.matmul %0, %33, %cst_25 {dimension_numbers = #tpu.dot_dimension_numbers<[1], [0], [0], [1], [0, 0, 1, 1], [], []>} : vector<128x128xf32>, vector<128x32xf32>, vector<128x32xf32> -> vector<128x32xf32>
    %35 = vector.broadcast %11 : vector<128x1xf32> to vector<128x32xf32>
    %36 = arith.mulf %34, %35 : vector<128x32xf32>
    %cst_26 = arith.constant dense<0.000000e+00> : vector<128x32xf32>
    %37 = tpu.matmul %36, %29, %cst_26 {dimension_numbers = #tpu.dot_dimension_numbers<[1], [0], [0], [1], [0, 0, 1, 1], [], []>} : vector<128x32xf32>, vector<32x32xf32>, vector<128x32xf32> -> vector<128x32xf32>
    %cst_27 = arith.constant dense<0.000000e+00> : vector<128x32xf32>
    %38 = tpu.matmul %28, %30, %cst_27 {dimension_numbers = #tpu.dot_dimension_numbers<[1], [0], [0], [1], [0, 0, 1, 1], [], []>} : vector<128x32xf32>, vector<32x32xf32>, vector<128x32xf32> -> vector<128x32xf32>
    %39 = arith.addf %37, %38 : vector<128x32xf32>
    %40 = vector.broadcast %31 : vector<1x32xf32> to vector<128x32xf32>
    %41 = arith.addf %39, %40 : vector<128x32xf32>
    %cst_28 = arith.constant 0.000000e+00 : f32
    %42 = vector.broadcast %cst_28 : f32 to vector<128x32xf32>
    %43 = arith.maximumf %41, %42 : vector<128x32xf32>
    %c0_29 = arith.constant 0 : index
    %c0_30 = arith.constant 0 : index
    %44 = vector.load %arg10[%c0_29, %c0_30] : memref<32x32xf32, #tpu.memory_space<vmem>>, vector<32x32xf32>
    %c0_31 = arith.constant 0 : index
    %c0_32 = arith.constant 0 : index
    %45 = vector.load %arg11[%c0_31, %c0_32] : memref<32x32xf32, #tpu.memory_space<vmem>>, vector<32x32xf32>
    %c0_33 = arith.constant 0 : index
    %c0_34 = arith.constant 0 : index
    %46 = vector.load %arg12[%c0_33, %c0_34] : memref<1x32xf32, #tpu.memory_space<vmem>>, vector<1x32xf32>
    %47 = vector.broadcast %12 : vector<128x1xf32> to vector<128x32xf32>
    %48 = arith.mulf %43, %47 : vector<128x32xf32>
    %cst_35 = arith.constant dense<0.000000e+00> : vector<128x32xf32>
    %49 = tpu.matmul %0, %48, %cst_35 {dimension_numbers = #tpu.dot_dimension_numbers<[1], [0], [0], [1], [0, 0, 1, 1], [], []>} : vector<128x128xf32>, vector<128x32xf32>, vector<128x32xf32> -> vector<128x32xf32>
    %50 = vector.broadcast %11 : vector<128x1xf32> to vector<128x32xf32>
    %51 = arith.mulf %49, %50 : vector<128x32xf32>
    %cst_36 = arith.constant dense<0.000000e+00> : vector<128x32xf32>
    %52 = tpu.matmul %51, %44, %cst_36 {dimension_numbers = #tpu.dot_dimension_numbers<[1], [0], [0], [1], [0, 0, 1, 1], [], []>} : vector<128x32xf32>, vector<32x32xf32>, vector<128x32xf32> -> vector<128x32xf32>
    %cst_37 = arith.constant dense<0.000000e+00> : vector<128x32xf32>
    %53 = tpu.matmul %43, %45, %cst_37 {dimension_numbers = #tpu.dot_dimension_numbers<[1], [0], [0], [1], [0, 0, 1, 1], [], []>} : vector<128x32xf32>, vector<32x32xf32>, vector<128x32xf32> -> vector<128x32xf32>
    %54 = arith.addf %52, %53 : vector<128x32xf32>
    %55 = vector.broadcast %46 : vector<1x32xf32> to vector<128x32xf32>
    %56 = arith.addf %54, %55 : vector<128x32xf32>
    %cst_38 = arith.constant 0.000000e+00 : f32
    %57 = vector.broadcast %cst_38 : f32 to vector<128x32xf32>
    %58 = arith.maximumf %56, %57 : vector<128x32xf32>
    %c0_39 = arith.constant 0 : index
    %c0_40 = arith.constant 0 : index
    %59 = vector.load %arg13[%c0_39, %c0_40] : memref<32x3xf32, #tpu.memory_space<vmem>>, vector<32x3xf32>
    %c0_41 = arith.constant 0 : index
    %c0_42 = arith.constant 0 : index
    %60 = vector.load %arg14[%c0_41, %c0_42] : memref<32x3xf32, #tpu.memory_space<vmem>>, vector<32x3xf32>
    %c0_43 = arith.constant 0 : index
    %c0_44 = arith.constant 0 : index
    %61 = vector.load %arg15[%c0_43, %c0_44] : memref<1x3xf32, #tpu.memory_space<vmem>>, vector<1x3xf32>
    %62 = vector.broadcast %12 : vector<128x1xf32> to vector<128x32xf32>
    %63 = arith.mulf %58, %62 : vector<128x32xf32>
    %cst_45 = arith.constant dense<0.000000e+00> : vector<128x32xf32>
    %64 = tpu.matmul %0, %63, %cst_45 {dimension_numbers = #tpu.dot_dimension_numbers<[1], [0], [0], [1], [0, 0, 1, 1], [], []>} : vector<128x128xf32>, vector<128x32xf32>, vector<128x32xf32> -> vector<128x32xf32>
    %65 = vector.broadcast %11 : vector<128x1xf32> to vector<128x32xf32>
    %66 = arith.mulf %64, %65 : vector<128x32xf32>
    %cst_46 = arith.constant dense<0.000000e+00> : vector<128x3xf32>
    %67 = tpu.matmul %66, %59, %cst_46 {dimension_numbers = #tpu.dot_dimension_numbers<[1], [0], [0], [1], [0, 0, 1, 1], [], []>} : vector<128x32xf32>, vector<32x3xf32>, vector<128x3xf32> -> vector<128x3xf32>
    %cst_47 = arith.constant dense<0.000000e+00> : vector<128x3xf32>
    %68 = tpu.matmul %58, %60, %cst_47 {dimension_numbers = #tpu.dot_dimension_numbers<[1], [0], [0], [1], [0, 0, 1, 1], [], []>} : vector<128x32xf32>, vector<32x3xf32>, vector<128x3xf32> -> vector<128x3xf32>
    %69 = arith.addf %67, %68 : vector<128x3xf32>
    %70 = vector.broadcast %61 : vector<1x3xf32> to vector<128x3xf32>
    %71 = arith.addf %69, %70 : vector<128x3xf32>
    %c0_48 = arith.constant 0 : index
    %c0_49 = arith.constant 0 : index
    %72 = vector.load %arg16[%c0_48, %c0_49] : memref<128x3xf32, #tpu.memory_space<vmem>>, vector<128x3xf32>
    tpu.vector_store %arg16[%c0_48, %c0_49], %71 {strides = array<i32>} : memref<128x3xf32, #tpu.memory_space<vmem>>, vector<128x3xf32>,
    return
  }
}

</mosaic_0001>

<llo_original>
// kernel: policy_graph_conv_net.1
$region0: #{policy_graph_conv_net.1}
  #allocation0 [shape = 'u32[]', space=smem, size = 0x4, offset = 0x4, fixed_abs, tag = 'smem constant byte address 0x4 - core index']
  #allocation1 [shape = 'u32[144,128]{1,0:T(1,128)}', space=vmem, size = 0x12000, scoped, tag = 'internal scratch']
  %s0 = inlined_call_operand.vmem [shape: f32[128,128], index: 0, kind: input, shape index: {}]
  %s1 = inlined_call_operand.vmem [shape: f32[128,1], index: 1, kind: input, shape index: {}]
  %s2 = inlined_call_operand.vmem [shape: f32[1,128], index: 2, kind: input, shape index: {}]
  %s3 = inlined_call_operand.vmem [shape: f32[128,4], index: 3, kind: input, shape index: {}]
  %s4 = inlined_call_operand.vmem [shape: f32[4,32], index: 4, kind: input, shape index: {}]
  %s5 = inlined_call_operand.vmem [shape: f32[4,32], index: 5, kind: input, shape index: {}]
  %s6 = inlined_call_operand.vmem [shape: f32[1,32], index: 6, kind: input, shape index: {}]
  %s7 = inlined_call_operand.vmem [shape: f32[32,32], index: 7, kind: input, shape index: {}]
  %s8 = inlined_call_operand.vmem [shape: f32[32,32], index: 8, kind: input, shape index: {}]
  %s9 = inlined_call_operand.vmem [shape: f32[1,32], index: 9, kind: input, shape index: {}]
  %s10 = inlined_call_operand.vmem [shape: f32[32,32], index: 10, kind: input, shape index: {}]
  %s11 = inlined_call_operand.vmem [shape: f32[32,32], index: 11, kind: input, shape index: {}]
  %s12 = inlined_call_operand.vmem [shape: f32[1,32], index: 12, kind: input, shape index: {}]
  %s13 = inlined_call_operand.vmem [shape: f32[32,3], index: 13, kind: input, shape index: {}]
  %s14 = inlined_call_operand.vmem [shape: f32[32,3], index: 14, kind: input, shape index: {}]
  %s15 = inlined_call_operand.vmem [shape: f32[1,3], index: 15, kind: input, shape index: {}]
  %s16 = inlined_call_operand.vmem [shape: f32[128,3], index: 16, kind: output, shape index: {}]
  %s17 = sld [smem:[#allocation0]]
  $region74: #{policy_graph_conv_net.1} parent=0
    _
  %s19 = ssub.s32 1, %s17
  %s20 = scalar_select 0, %s19, %s17
  // Predicated region
  $region2: #{policy_graph_conv_net.1} parent=0 // pred_check
    _
  $region3: #{policy_graph_conv_net.1} parent=0 // pred_check_branch
    %22 = sbr.rel (0) target = $region5
  $region4: #{policy_graph_conv_net.1} parent=0 // pred_region
    _
  $region5: #{policy_graph_conv_net.1} parent=0 // pred_fallthru
    _
  // Predicated region
  $region6: #{policy_graph_conv_net.1} parent=0 // pred_check
    _
  $region7: #{policy_graph_conv_net.1} parent=0 // pred_check_branch
    %24 = sbr.rel (0) target = $region9
  $region8: #{policy_graph_conv_net.1} parent=0 // pred_region
    _
  $region9: #{policy_graph_conv_net.1} parent=0 // pred_fallthru
    _
  // Predicated region
  $region10: #{policy_graph_conv_net.1} parent=0 // pred_check
    _
  $region11: #{policy_graph_conv_net.1} parent=0 // pred_check_branch
    %26 = sbr.rel (0) target = $region13
  $region12: #{policy_graph_conv_net.1} parent=0 // pred_region
    _
  $region13: #{policy_graph_conv_net.1} parent=0 // pred_fallthru
    _
  // Predicated region
  $region14: #{policy_graph_conv_net.1} parent=0 // pred_check
    _
  $region15: #{policy_graph_conv_net.1} parent=0 // pred_check_branch
    %28 = sbr.rel (0) target = $region17
  $region16: #{policy_graph_conv_net.1} parent=0 // pred_region
    _
  $region17: #{policy_graph_conv_net.1} parent=0 // pred_fallthru
    _
  // Predicated region
  $region18: #{policy_graph_conv_net.1} parent=0 // pred_check
    _
  $region19: #{policy_graph_conv_net.1} parent=0 // pred_check_branch
    %30 = sbr.rel (0) target = $region21
  $region20: #{policy_graph_conv_net.1} parent=0 // pred_region
    _
  $region21: #{policy_graph_conv_net.1} parent=0 // pred_fallthru
    _
  // Predicated region
  $region22: #{policy_graph_conv_net.1} parent=0 // pred_check
    _
  $region23: #{policy_graph_conv_net.1} parent=0 // pred_check_branch
    %32 = sbr.rel (0) target = $region25
  $region24: #{policy_graph_conv_net.1} parent=0 // pred_region
    _
  $region25: #{policy_graph_conv_net.1} parent=0 // pred_fallthru
    _
  // Predicated region
  $region26: #{policy_graph_conv_net.1} parent=0 // pred_check
    _
  $region27: #{policy_graph_conv_net.1} parent=0 // pred_check_branch
    %34 = sbr.rel (0) target = $region29
  $region28: #{policy_graph_conv_net.1} parent=0 // pred_region
    _
  $region29: #{policy_graph_conv_net.1} parent=0 // pred_fallthru
    _
  // Predicated region
  $region30: #{policy_graph_conv_net.1} parent=0 // pred_check
    _
  $region31: #{policy_graph_conv_net.1} parent=0 // pred_check_branch
    %36 = sbr.rel (0) target = $region33
  $region32: #{policy_graph_conv_net.1} parent=0 // pred_region
    _
  $region33: #{policy_graph_conv_net.1} parent=0 // pred_fallthru
    _
  // Predicated region
  $region34: #{policy_graph_conv_net.1} parent=0 // pred_check
    _
  $region35: #{policy_graph_conv_net.1} parent=0 // pred_check_branch
    %38 = sbr.rel (0) target = $region37
  $region36: #{policy_graph_conv_net.1} parent=0 // pred_region
    _
  $region37: #{policy_graph_conv_net.1} parent=0 // pred_fallthru
    _
  // Predicated region
  $region38: #{policy_graph_conv_net.1} parent=0 // pred_check
    _
  $region39: #{policy_graph_conv_net.1} parent=0 // pred_check_branch
    %40 = sbr.rel (0) target = $region41
  $region40: #{policy_graph_conv_net.1} parent=0 // pred_region
    _
  $region41: #{policy_graph_conv_net.1} parent=0 // pred_fallthru
    _
  // Predicated region
  $region42: #{policy_graph_conv_net.1} parent=0 // pred_check
    _
  $region43: #{policy_graph_conv_net.1} parent=0 // pred_check_branch
    %42 = sbr.rel (0) target = $region45
  $region44: #{policy_graph_conv_net.1} parent=0 // pred_region
    _
  $region45: #{policy_graph_conv_net.1} parent=0 // pred_fallthru
    _
  // Predicated region
  $region46: #{policy_graph_conv_net.1} parent=0 // pred_check
    _
  $region47: #{policy_graph_conv_net.1} parent=0 // pred_check_branch
    %44 = sbr.rel (0) target = $region49
  $region48: #{policy_graph_conv_net.1} parent=0 // pred_region
    _
  $region49: #{policy_graph_conv_net.1} parent=0 // pred_fallthru
    _
  // Predicated region
  $region50: #{policy_graph_conv_net.1} parent=0 // pred_check
    _
  $region51: #{policy_graph_conv_net.1} parent=0 // pred_check_branch
    %46 = sbr.rel (0) target = $region53
  $region52: #{policy_graph_conv_net.1} parent=0 // pred_region
    _
  $region53: #{policy_graph_conv_net.1} parent=0 // pred_fallthru
    _
  // Predicated region
  $region54: #{policy_graph_conv_net.1} parent=0 // pred_check
    _
  $region55: #{policy_graph_conv_net.1} parent=0 // pred_check_branch
    %48 = sbr.rel (0) target = $region57
  $region56: #{policy_graph_conv_net.1} parent=0 // pred_region
    _
  $region57: #{policy_graph_conv_net.1} parent=0 // pred_fallthru
    _
  // Predicated region
  $region58: #{policy_graph_conv_net.1} parent=0 // pred_check
    _
  $region59: #{policy_graph_conv_net.1} parent=0 // pred_check_branch
    %50 = sbr.rel (0) target = $region61
  $region60: #{policy_graph_conv_net.1} parent=0 // pred_region
    _
  $region61: #{policy_graph_conv_net.1} parent=0 // pred_fallthru
    _
  // Predicated region
  $region62: #{policy_graph_conv_net.1} parent=0 // pred_check
    _
  $region63: #{policy_graph_conv_net.1} parent=0 // pred_check_branch
    %52 = sbr.rel (0) target = $region65
  $region64: #{policy_graph_conv_net.1} parent=0 // pred_region
    _
  $region65: #{policy_graph_conv_net.1} parent=0 // pred_fallthru
    _
  %v53 = vld [vmem:[%s0] sm:$0xff]
  %v54 = vld [vmem:[%s0 + $0x8] sm:$0xff]
  %v55 = vld [vmem:[%s0 + $0x10] sm:$0xff]
  %v56 = vld [vmem:[%s0 + $0x18] sm:$0xff]
  %v57 = vld [vmem:[%s0 + $0x20] sm:$0xff]
  %v58 = vld [vmem:[%s0 + $0x28] sm:$0xff]
  %v59 = vld [vmem:[%s0 + $0x30] sm:$0xff]
  %v60 = vld [vmem:[%s0 + $0x38] sm:$0xff]
  %v61 = vld [vmem:[%s0 + $0x40] sm:$0xff]
  %v62 = vld [vmem:[%s0 + $0x48] sm:$0xff]
  %v63 = vld [vmem:[%s0 + $0x50] sm:$0xff]
  %v64 = vld [vmem:[%s0 + $0x58] sm:$0xff]
  %v65 = vld [vmem:[%s0 + $0x60] sm:$0xff]
  %v66 = vld [vmem:[%s0 + $0x68] sm:$0xff]
  %v67 = vld [vmem:[%s0 + $0x70] sm:$0xff]
  %v68 = vld [vmem:[%s0 + $0x78] sm:$0xff]
  %v69 = vld [vmem:[%s1] sm:$0xff]
  %v70 = vld [vmem:[%s1 + $0x8] sm:$0xff]
  %v71 = vld [vmem:[%s1 + $0x10] sm:$0xff]
  %v72 = vld [vmem:[%s1 + $0x18] sm:$0xff]
  %v73 = vld [vmem:[%s1 + $0x20] sm:$0xff]
  %v74 = vld [vmem:[%s1 + $0x28] sm:$0xff]
  %v75 = vld [vmem:[%s1 + $0x30] sm:$0xff]
  %v76 = vld [vmem:[%s1 + $0x38] sm:$0xff]
  %v77 = vld [vmem:[%s1 + $0x40] sm:$0xff]
  %v78 = vld [vmem:[%s1 + $0x48] sm:$0xff]
  %v79 = vld [vmem:[%s1 + $0x50] sm:$0xff]
  %v80 = vld [vmem:[%s1 + $0x58] sm:$0xff]
  %v81 = vld [vmem:[%s1 + $0x60] sm:$0xff]
  %v82 = vld [vmem:[%s1 + $0x68] sm:$0xff]
  %v83 = vld [vmem:[%s1 + $0x70] sm:$0xff]
  %v84 = vld [vmem:[%s1 + $0x78] sm:$0xff]
  %v85 = vld [vmem:[%s2] sm:$0x1]
  %v87 = vlaneseq
  %v88 = vshrl.u32 %v87, 7
  %v89 = vsub.s32 0, %v88
  %v90 = vrot.slane %v85, %v89
  %v92 = vmul.f32 %v53, %v90
  %v93 = vmul.f32 %v54, %v90
  %v94 = vmul.f32 %v55, %v90
  %v95 = vmul.f32 %v56, %v90
  %v96 = vmul.f32 %v57, %v90
  %v97 = vmul.f32 %v58, %v90
  %v98 = vmul.f32 %v59, %v90
  %v99 = vmul.f32 %v60, %v90
  %v100 = vmul.f32 %v61, %v90
  %v101 = vmul.f32 %v62, %v90
  %v102 = vmul.f32 %v63, %v90
  %v103 = vmul.f32 %v64, %v90
  %v104 = vmul.f32 %v65, %v90
  %v105 = vmul.f32 %v66, %v90
  %v106 = vmul.f32 %v67, %v90
  %v107 = vmul.f32 %v68, %v90
  %108 = vadd.xlane.f32.xlu0 %v92
  %v109 = vpop.xlane.xlu0 %108
  %110 = vadd.xlane.f32.xlu0 %v93
  %v111 = vpop.xlane.xlu0 %110
  %112 = vadd.xlane.f32.xlu0 %v94
  %v113 = vpop.xlane.xlu0 %112
  %114 = vadd.xlane.f32.xlu0 %v95
  %v115 = vpop.xlane.xlu0 %114
  %116 = vadd.xlane.f32.xlu0 %v96
  %v117 = vpop.xlane.xlu0 %116
  %118 = vadd.xlane.f32.xlu0 %v97
  %v119 = vpop.xlane.xlu0 %118
  %120 = vadd.xlane.f32.xlu0 %v98
  %v121 = vpop.xlane.xlu0 %120
  %122 = vadd.xlane.f32.xlu0 %v99
  %v123 = vpop.xlane.xlu0 %122
  %124 = vadd.xlane.f32.xlu0 %v100
  %v125 = vpop.xlane.xlu0 %124
  %126 = vadd.xlane.f32.xlu0 %v101
  %v127 = vpop.xlane.xlu0 %126
  %128 = vadd.xlane.f32.xlu0 %v102
  %v129 = vpop.xlane.xlu0 %128
  %130 = vadd.xlane.f32.xlu0 %v103
  %v131 = vpop.xlane.xlu0 %130
  %132 = vadd.xlane.f32.xlu0 %v104
  %v133 = vpop.xlane.xlu0 %132
  %134 = vadd.xlane.f32.xlu0 %v105
  %v135 = vpop.xlane.xlu0 %134
  %136 = vadd.xlane.f32.xlu0 %v106
  %v137 = vpop.xlane.xlu0 %136
  %138 = vadd.xlane.f32.xlu0 %v107
  %v139 = vpop.xlane.xlu0 %138
  %vm140 = vcmp.eq.f32.partialorder %v109, 0.0
  %vm141 = vcmp.eq.f32.partialorder %v111, 0.0
  %vm142 = vcmp.eq.f32.partialorder %v113, 0.0
  %vm143 = vcmp.eq.f32.partialorder %v115, 0.0
  %vm144 = vcmp.eq.f32.partialorder %v117, 0.0
  %vm145 = vcmp.eq.f32.partialorder %v119, 0.0
  %vm146 = vcmp.eq.f32.partialorder %v121, 0.0
  %vm147 = vcmp.eq.f32.partialorder %v123, 0.0
  %vm148 = vcmp.eq.f32.partialorder %v125, 0.0
  %vm149 = vcmp.eq.f32.partialorder %v127, 0.0
  %vm150 = vcmp.eq.f32.partialorder %v129, 0.0
  %vm151 = vcmp.eq.f32.partialorder %v131, 0.0
  %vm152 = vcmp.eq.f32.partialorder %v133, 0.0
  %vm153 = vcmp.eq.f32.partialorder %v135, 0.0
  %vm154 = vcmp.eq.f32.partialorder %v137, 0.0
  %vm155 = vcmp.eq.f32.partialorder %v139, 0.0
  %v156 = vrsqrt.pop %v109
  %v157 = vrsqrt.pop %v111
  %v158 = vrsqrt.pop %v113
  %v159 = vrsqrt.pop %v115
  %v160 = vrsqrt.pop %v117
  %v161 = vrsqrt.pop %v119
  %v162 = vrsqrt.pop %v121
  %v163 = vrsqrt.pop %v123
  %v164 = vrsqrt.pop %v125
  %v165 = vrsqrt.pop %v127
  %v166 = vrsqrt.pop %v129
  %v167 = vrsqrt.pop %v131
  %v168 = vrsqrt.pop %v133
  %v169 = vrsqrt.pop %v135
  %v170 = vrsqrt.pop %v137
  %v171 = vrsqrt.pop %v139
  %v172 = vsel %vm140, 1.0, %v156
  %v173 = vsel %vm141, 1.0, %v157
  %v174 = vsel %vm142, 1.0, %v158
  %v175 = vsel %vm143, 1.0, %v159
  %v176 = vsel %vm144, 1.0, %v160
  %v177 = vsel %vm145, 1.0, %v161
  %v178 = vsel %vm146, 1.0, %v162
  %v179 = vsel %vm147, 1.0, %v163
  %v180 = vsel %vm148, 1.0, %v164
  %v181 = vsel %vm149, 1.0, %v165
  %v182 = vsel %vm150, 1.0, %v166
  %v183 = vsel %vm151, 1.0, %v167
  %v184 = vsel %vm152, 1.0, %v168
  %v185 = vsel %vm153, 1.0, %v169
  %v186 = vsel %vm154, 1.0, %v170
  %v187 = vsel %vm155, 1.0, %v171
  %v188 = vmul.f32 %v172, %v69
  %v189 = vmul.f32 %v173, %v70
  %v190 = vmul.f32 %v174, %v71
  %v191 = vmul.f32 %v175, %v72
  %v192 = vmul.f32 %v176, %v73
  %v193 = vmul.f32 %v177, %v74
  %v194 = vmul.f32 %v178, %v75
  %v195 = vmul.f32 %v179, %v76
  %v196 = vmul.f32 %v180, %v77
  %v197 = vmul.f32 %v181, %v78
  %v198 = vmul.f32 %v182, %v79
  %v199 = vmul.f32 %v183, %v80
  %v200 = vmul.f32 %v184, %v81
  %v201 = vmul.f32 %v185, %v82
  %v202 = vmul.f32 %v186, %v83
  %v203 = vmul.f32 %v187, %v84
  %v204 = vld [vmem:[%s3] sm:$0xff]
  %v205 = vld [vmem:[%s3 + $0x8] sm:$0xff]
  %v206 = vld [vmem:[%s3 + $0x10] sm:$0xff]
  %v207 = vld [vmem:[%s3 + $0x18] sm:$0xff]
  %v208 = vld [vmem:[%s3 + $0x20] sm:$0xff]
  %v209 = vld [vmem:[%s3 + $0x28] sm:$0xff]
  %v210 = vld [vmem:[%s3 + $0x30] sm:$0xff]
  %v211 = vld [vmem:[%s3 + $0x38] sm:$0xff]
  %v212 = vld [vmem:[%s3 + $0x40] sm:$0xff]
  %v213 = vld [vmem:[%s3 + $0x48] sm:$0xff]
  %v214 = vld [vmem:[%s3 + $0x50] sm:$0xff]
  %v215 = vld [vmem:[%s3 + $0x58] sm:$0xff]
  %v216 = vld [vmem:[%s3 + $0x60] sm:$0xff]
  %v217 = vld [vmem:[%s3 + $0x68] sm:$0xff]
  %v218 = vld [vmem:[%s3 + $0x70] sm:$0xff]
  %v219 = vld [vmem:[%s3 + $0x78] sm:$0xff]
  %v220 = vld [vmem:[%s4] sm:$0xf]
  %v221 = vld [vmem:[%s5] sm:$0xf]
  %v222 = vld [vmem:[%s6] sm:$0x1]
  %224 = vset.pattern.permute.xlu0 0
  %225 = vperm.xlu0 %224, %v188
  %v226 = vpop.permute.xlu0 %225
  %229 = vset.pattern.permute.xlu0 0
  %230 = vperm.xlu0 %229, %v189
  %v231 = vpop.permute.xlu0 %230
  %234 = vset.pattern.permute.xlu0 0
  %235 = vperm.xlu0 %234, %v190
  %v236 = vpop.permute.xlu0 %235
  %239 = vset.pattern.permute.xlu0 0
  %240 = vperm.xlu0 %239, %v191
  %v241 = vpop.permute.xlu0 %240
  %244 = vset.pattern.permute.xlu0 0
  %245 = vperm.xlu0 %244, %v192
  %v246 = vpop.permute.xlu0 %245
  %249 = vset.pattern.permute.xlu0 0
  %250 = vperm.xlu0 %249, %v193
  %v251 = vpop.permute.xlu0 %250
  %254 = vset.pattern.permute.xlu0 0
  %255 = vperm.xlu0 %254, %v194
  %v256 = vpop.permute.xlu0 %255
  %259 = vset.pattern.permute.xlu0 0
  %260 = vperm.xlu0 %259, %v195
  %v261 = vpop.permute.xlu0 %260
  %264 = vset.pattern.permute.xlu0 0
  %265 = vperm.xlu0 %264, %v196
  %v266 = vpop.permute.xlu0 %265
  %269 = vset.pattern.permute.xlu0 0
  %270 = vperm.xlu0 %269, %v197
  %v271 = vpop.permute.xlu0 %270
  %274 = vset.pattern.permute.xlu0 0
  %275 = vperm.xlu0 %274, %v198
  %v276 = vpop.permute.xlu0 %275
  %279 = vset.pattern.permute.xlu0 0
  %280 = vperm.xlu0 %279, %v199
  %v281 = vpop.permute.xlu0 %280
  %284 = vset.pattern.permute.xlu0 0
  %285 = vperm.xlu0 %284, %v200
  %v286 = vpop.permute.xlu0 %285
  %289 = vset.pattern.permute.xlu0 0
  %290 = vperm.xlu0 %289, %v201
  %v291 = vpop.permute.xlu0 %290
  %294 = vset.pattern.permute.xlu0 0
  %295 = vperm.xlu0 %294, %v202
  %v296 = vpop.permute.xlu0 %295
  %299 = vset.pattern.permute.xlu0 0
  %300 = vperm.xlu0 %299, %v203
  %v301 = vpop.permute.xlu0 %300
  %v303 = vmul.f32 %v204, %v226
  %v304 = vmul.f32 %v205, %v231
  %v305 = vmul.f32 %v206, %v236
  %v306 = vmul.f32 %v207, %v241
  %v307 = vmul.f32 %v208, %v246
  %v308 = vmul.f32 %v209, %v251
  %v309 = vmul.f32 %v210, %v256
  %v310 = vmul.f32 %v211, %v261
  %v311 = vmul.f32 %v212, %v266
  %v312 = vmul.f32 %v213, %v271
  %v313 = vmul.f32 %v214, %v276
  %v314 = vmul.f32 %v215, %v281
  %v315 = vmul.f32 %v216, %v286
  %v316 = vmul.f32 %v217, %v291
  %v317 = vmul.f32 %v218, %v296
  %v318 = vmul.f32 %v219, %v301
  %319 = vmatprep.subr.mxu0 0.0
  %320 = vmatpush1.msra.mxu0 %v303
  %321 = vmatprep.subr.mxu0 0.0
  %322 = vmatpush1.msra.mxu0 %v304
  %323 = vmatprep.subr.mxu0 0.0
  %324 = vmatpush1.msra.mxu0 %v305
  %325 = vmatprep.subr.mxu0 0.0
  %326 = vmatpush1.msra.mxu0 %v306
  %327 = vmatprep.subr.mxu0 0.0
  %328 = vmatpush1.msra.mxu0 %v307
  %329 = vmatprep.subr.mxu0 0.0
  %330 = vmatpush1.msra.mxu0 %v308
  %331 = vmatprep.subr.mxu0 0.0
  %332 = vmatpush1.msra.mxu0 %v309
  %333 = vmatprep.subr.mxu0 0.0
  %334 = vmatpush1.msra.mxu0 %v310
  %335 = vmatprep.subr.mxu0 0.0
  %336 = vmatpush1.msra.mxu0 %v311
  %337 = vmatprep.subr.mxu0 0.0
  %338 = vmatpush1.msra.mxu0 %v312
  %339 = vmatprep.subr.mxu0 0.0
  %340 = vmatpush1.msra.mxu0 %v313
  %341 = vmatprep.subr.mxu0 0.0
  %342 = vmatpush1.msra.mxu0 %v314
  %343 = vmatprep.subr.mxu0 0.0
  %344 = vmatpush1.msra.mxu0 %v315
  %345 = vmatprep.subr.mxu0 0.0
  %346 = vmatpush1.msra.mxu0 %v316
  %347 = vmatprep.subr.mxu0 0.0
  %348 = vmatpush1.msra.mxu0 %v317
  %349 = vmatprep.subr.mxu0 0.0
  %350 = vmatpush1.msra.mxu0 %v318
  %351 = vmatprep.subr.mxu0 0.0
  %352 = vmatpush1.msra.mxu0 0.0
  %353 = vmatprep.subr.mxu0 0.0
  %354 = vmatpush1.msra.mxu0 0.0
  %355 = vmatprep.subr.mxu0 0.0
  %356 = vmatpush1.msra.mxu0 0.0
  %357 = vmatprep.subr.mxu0 0.0
  %358 = vmatpush1.msra.mxu0 0.0
  %359 = vmatprep.subr.mxu0 0.0
  %360 = vmatpush1.msra.mxu0 0.0
  %361 = vmatprep.subr.mxu0 0.0
  %362 = vmatpush1.msra.mxu0 0.0
  %363 = vmatprep.subr.mxu0 0.0
  %364 = vmatpush1.msra.mxu0 0.0
  %365 = vmatprep.subr.mxu0 0.0
  %366 = vmatpush1.msra.mxu0 0.0
  %367 = vmatprep.subr.mxu0 0.0
  %368 = vmatpush1.msra.mxu0 0.0
  %369 = vmatprep.subr.mxu0 0.0
  %370 = vmatpush1.msra.mxu0 0.0
  %371 = vmatprep.subr.mxu0 0.0
  %372 = vmatpush1.msra.mxu0 0.0
  %373 = vmatprep.subr.mxu0 0.0
  %374 = vmatpush1.msra.mxu0 0.0
  %375 = vmatprep.subr.mxu0 0.0
  %376 = vmatpush1.msra.mxu0 0.0
  %377 = vmatprep.subr.mxu0 0.0
  %378 = vmatpush1.msra.mxu0 0.0
  %379 = vmatprep.subr.mxu0 0.0
  %380 = vmatpush1.msra.mxu0 0.0
  %381 = vmatprep.subr.mxu0 0.0
  %382 = vmatpush1.msra.mxu0 0.0
  %383 = vmatprep.mubr.f32.mxu0 0.0
  %384 = vmatmul.mubr.f32.gmra.mrb[0].mxu0 %v53
  %v385 = vpop.f32.mrb[0].mxu0
  %v386 = vadd.f32 0.0, %v385
  %v387 = vpop.f32.mrb[0].mxu0
  %388 = vmatprep.mubr.f32.mxu0 0.0
  %389 = vmatmul.mubr.f32.gmra.mrb[0].mxu0 %v54
  %v390 = vpop.f32.mrb[0].mxu0
  %v391 = vadd.f32 0.0, %v390
  %v392 = vpop.f32.mrb[0].mxu0
  %393 = vmatprep.mubr.f32.mxu0 0.0
  %394 = vmatmul.mubr.f32.gmra.mrb[0].mxu0 %v55
  %v395 = vpop.f32.mrb[0].mxu0
  %v396 = vadd.f32 0.0, %v395
  %v397 = vpop.f32.mrb[0].mxu0
  %398 = vmatprep.mubr.f32.mxu0 0.0
  %399 = vmatmul.mubr.f32.gmra.mrb[0].mxu0 %v56
  %v400 = vpop.f32.mrb[0].mxu0
  %v401 = vadd.f32 0.0, %v400
  %v402 = vpop.f32.mrb[0].mxu0
  %403 = vmatprep.mubr.f32.mxu0 0.0
  %404 = vmatmul.mubr.f32.gmra.mrb[0].mxu0 %v57
  %v405 = vpop.f32.mrb[0].mxu0
  %v406 = vadd.f32 0.0, %v405
  %v407 = vpop.f32.mrb[0].mxu0
  %408 = vmatprep.mubr.f32.mxu0 0.0
  %409 = vmatmul.mubr.f32.gmra.mrb[0].mxu0 %v58
  %v410 = vpop.f32.mrb[0].mxu0
  %v411 = vadd.f32 0.0, %v410
  %v412 = vpop.f32.mrb[0].mxu0
  %413 = vmatprep.mubr.f32.mxu0 0.0
  %414 = vmatmul.mubr.f32.gmra.mrb[0].mxu0 %v59
  %v415 = vpop.f32.mrb[0].mxu0
  %v416 = vadd.f32 0.0, %v415
  %v417 = vpop.f32.mrb[0].mxu0
  %418 = vmatprep.mubr.f32.mxu0 0.0
  %419 = vmatmul.mubr.f32.gmra.mrb[0].mxu0 %v60
  %v420 = vpop.f32.mrb[0].mxu0
  %v421 = vadd.f32 0.0, %v420
  %v422 = vpop.f32.mrb[0].mxu0
  %423 = vmatprep.mubr.f32.mxu0 0.0
  %424 = vmatmul.mubr.f32.gmra.mrb[0].mxu0 %v61
  %v425 = vpop.f32.mrb[0].mxu0
  %v426 = vadd.f32 0.0, %v425
  %v427 = vpop.f32.mrb[0].mxu0
  %428 = vmatprep.mubr.f32.mxu0 0.0
  %429 = vmatmul.mubr.f32.gmra.mrb[0].mxu0 %v62
  %v430 = vpop.f32.mrb[0].mxu0
  %v431 = vadd.f32 0.0, %v430
  %v432 = vpop.f32.mrb[0].mxu0
  %433 = vmatprep.mubr.f32.mxu0 0.0
  %434 = vmatmul.mubr.f32.gmra.mrb[0].mxu0 %v63
  %v435 = vpop.f32.mrb[0].mxu0
  %v436 = vadd.f32 0.0, %v435
  %v437 = vpop.f32.mrb[0].mxu0
  %438 = vmatprep.mubr.f32.mxu0 0.0
  %439 = vmatmul.mubr.f32.gmra.mrb[0].mxu0 %v64
  %v440 = vpop.f32.mrb[0].mxu0
  %v441 = vadd.f32 0.0, %v440
  %v442 = vpop.f32.mrb[0].mxu0
  %443 = vmatprep.mubr.f32.mxu0 0.0
  %444 = vmatmul.mubr.f32.gmra.mrb[0].mxu0 %v65
  %v445 = vpop.f32.mrb[0].mxu0
  %v446 = vadd.f32 0.0, %v445
  %v447 = vpop.f32.mrb[0].mxu0
  %448 = vmatprep.mubr.f32.mxu0 0.0
  %449 = vmatmul.mubr.f32.gmra.mrb[0].mxu0 %v66
  %v450 = vpop.f32.mrb[0].mxu0
  %v451 = vadd.f32 0.0, %v450
  %v452 = vpop.f32.mrb[0].mxu0
  %453 = vmatprep.mubr.f32.mxu0 0.0
  %454 = vmatmul.mubr.f32.gmra.mrb[0].mxu0 %v67
  %v455 = vpop.f32.mrb[0].mxu0
  %v456 = vadd.f32 0.0, %v455
  %v457 = vpop.f32.mrb[0].mxu0
  %458 = vmatprep.mubr.f32.mxu0 0.0
  %459 = vmatmul.mubr.f32.gmra.mrb[0].mxu0 %v68
  %v460 = vpop.f32.mrb[0].mxu0
  %v461 = vadd.f32 0.0, %v460
  %v462 = vpop.f32.mrb[0].mxu0
  %463 = vdwg.mxu0
  %v464 = vmul.f32 %v386, %v172
  %v465 = vmul.f32 %v391, %v173
  %v466 = vmul.f32 %v396, %v174
  %v467 = vmul.f32 %v401, %v175
  %v468 = vmul.f32 %v406, %v176
  %v469 = vmul.f32 %v411, %v177
  %v470 = vmul.f32 %v416, %v178
  %v471 = vmul.f32 %v421, %v179
  %v472 = vmul.f32 %v426, %v180
  %v473 = vmul.f32 %v431, %v181
  %v474 = vmul.f32 %v436, %v182
  %v475 = vmul.f32 %v441, %v183
  %v476 = vmul.f32 %v446, %v184
  %v477 = vmul.f32 %v451, %v185
  %v478 = vmul.f32 %v456, %v186
  %v479 = vmul.f32 %v461, %v187
  %vm480 = vcmask 31744
  %v482 = vsel %vm480, %v204, 0
  %v485 = vsel %vm480, %v205, 0
  %v488 = vsel %vm480, %v206, 0
  %v491 = vsel %vm480, %v207, 0
  %v494 = vsel %vm480, %v208, 0
  %v497 = vsel %vm480, %v209, 0
  %v500 = vsel %vm480, %v210, 0
  %v503 = vsel %vm480, %v211, 0
  %v506 = vsel %vm480, %v212, 0
  %v509 = vsel %vm480, %v213, 0
  %v512 = vsel %vm480, %v214, 0
  %v515 = vsel %vm480, %v215, 0
  %v518 = vsel %vm480, %v216, 0
  %v521 = vsel %vm480, %v217, 0
  %v524 = vsel %vm480, %v218, 0
  %v527 = vsel %vm480, %v219, 0
  %vm529 = vcmask 1043456
  %v531 = vsel %vm529, %v221, 0
  %533 = vmatprep.subr.mxu0 0.0
  %534 = vmatpush1.msra.mxu0 %v531
  %535 = vmatprep.subr.mxu0 0.0
  %536 = vmatpush1.msra.mxu0 0.0
  %537 = vmatprep.subr.mxu0 0.0
  %538 = vmatpush1.msra.mxu0 0.0
  %539 = vmatprep.subr.mxu0 0.0
  %540 = vmatpush1.msra.mxu0 0.0
  %541 = vmatprep.subr.mxu0 0.0
  %542 = vmatpush1.msra.mxu0 0.0
  %543 = vmatprep.subr.mxu0 0.0
  %544 = vmatpush1.msra.mxu0 0.0
  %545 = vmatprep.subr.mxu0 0.0
  %546 = vmatpush1.msra.mxu0 0.0
  %547 = vmatprep.subr.mxu0 0.0
  %548 = vmatpush1.msra.mxu0 0.0
  %549 = vmatprep.subr.mxu0 0.0
  %550 = vmatpush1.msra.mxu0 0.0
  %551 = vmatprep.subr.mxu0 0.0
  %552 = vmatpush1.msra.mxu0 0.0
  %553 = vmatprep.subr.mxu0 0.0
  %554 = vmatpush1.msra.mxu0 0.0
  %555 = vmatprep.subr.mxu0 0.0
  %556 = vmatpush1.msra.mxu0 0.0
  %557 = vmatprep.subr.mxu0 0.0
  %558 = vmatpush1.msra.mxu0 0.0
  %559 = vmatprep.subr.mxu0 0.0
  %560 = vmatpush1.msra.mxu0 0.0
  %561 = vmatprep.subr.mxu0 0.0
  %562 = vmatpush1.msra.mxu0 0.0
  %563 = vmatprep.subr.mxu0 0.0
  %564 = vmatpush1.msra.mxu0 0.0
  %565 = vmatprep.subr.mxu0 0.0
  %566 = vmatpush1.msra.mxu0 0.0
  %567 = vmatprep.subr.mxu0 0.0
  %568 = vmatpush1.msra.mxu0 0.0
  %569 = vmatprep.subr.mxu0 0.0
  %570 = vmatpush1.msra.mxu0 0.0
  %571 = vmatprep.subr.mxu0 0.0
  %572 = vmatpush1.msra.mxu0 0.0
  %573 = vmatprep.subr.mxu0 0.0
  %574 = vmatpush1.msra.mxu0 0.0
  %575 = vmatprep.subr.mxu0 0.0
  %576 = vmatpush1.msra.mxu0 0.0
  %577 = vmatprep.subr.mxu0 0.0
  %578 = vmatpush1.msra.mxu0 0.0
  %579 = vmatprep.subr.mxu0 0.0
  %580 = vmatpush1.msra.mxu0 0.0
  %581 = vmatprep.subr.mxu0 0.0
  %582 = vmatpush1.msra.mxu0 0.0
  %583 = vmatprep.subr.mxu0 0.0
  %584 = vmatpush1.msra.mxu0 0.0
  %585 = vmatprep.subr.mxu0 0.0
  %586 = vmatpush1.msra.mxu0 0.0
  %587 = vmatprep.subr.mxu0 0.0
  %588 = vmatpush1.msra.mxu0 0.0
  %589 = vmatprep.subr.mxu0 0.0
  %590 = vmatpush1.msra.mxu0 0.0
  %591 = vmatprep.subr.mxu0 0.0
  %592 = vmatpush1.msra.mxu0 0.0
  %593 = vmatprep.subr.mxu0 0.0
  %594 = vmatpush1.msra.mxu0 0.0
  %595 = vmatprep.subr.mxu0 0.0
  %596 = vmatpush1.msra.mxu0 0.0
  %597 = vmatprep.mubr.f32.mxu0 0.0
  %598 = vmatmul.mubr.f32.gmra.mrb[0].mxu0 %v482
  %v599 = vpop.f32.mrb[0].mxu0
  %v600 = vadd.f32 0.0, %v599
  %v601 = vpop.f32.mrb[0].mxu0
  %602 = vmatprep.mubr.f32.mxu0 0.0
  %603 = vmatmul.mubr.f32.gmra.mrb[0].mxu0 %v485
  %v604 = vpop.f32.mrb[0].mxu0
  %v605 = vadd.f32 0.0, %v604
  %v606 = vpop.f32.mrb[0].mxu0
  %607 = vmatprep.mubr.f32.mxu0 0.0
  %608 = vmatmul.mubr.f32.gmra.mrb[0].mxu0 %v488
  %v609 = vpop.f32.mrb[0].mxu0
  %v610 = vadd.f32 0.0, %v609
  %v611 = vpop.f32.mrb[0].mxu0
  %612 = vmatprep.mubr.f32.mxu0 0.0
  %613 = vmatmul.mubr.f32.gmra.mrb[0].mxu0 %v491
  %v614 = vpop.f32.mrb[0].mxu0
  %v615 = vadd.f32 0.0, %v614
  %v616 = vpop.f32.mrb[0].mxu0
  %617 = vmatprep.mubr.f32.mxu0 0.0
  %618 = vmatmul.mubr.f32.gmra.mrb[0].mxu0 %v494
  %v619 = vpop.f32.mrb[0].mxu0
  %v620 = vadd.f32 0.0, %v619
  %v621 = vpop.f32.mrb[0].mxu0
  %622 = vmatprep.mubr.f32.mxu0 0.0
  %623 = vmatmul.mubr.f32.gmra.mrb[0].mxu0 %v497
  %v624 = vpop.f32.mrb[0].mxu0
  %v625 = vadd.f32 0.0, %v624
  %v626 = vpop.f32.mrb[0].mxu0
  %627 = vmatprep.mubr.f32.mxu0 0.0
  %628 = vmatmul.mubr.f32.gmra.mrb[0].mxu0 %v500
  %v629 = vpop.f32.mrb[0].mxu0
  %v630 = vadd.f32 0.0, %v629
  %v631 = vpop.f32.mrb[0].mxu0
  %632 = vmatprep.mubr.f32.mxu0 0.0
  %633 = vmatmul.mubr.f32.gmra.mrb[0].mxu0 %v503
  %v634 = vpop.f32.mrb[0].mxu0
  %v635 = vadd.f32 0.0, %v634
  %v636 = vpop.f32.mrb[0].mxu0
  %637 = vmatprep.mubr.f32.mxu0 0.0
  %638 = vmatmul.mubr.f32.gmra.mrb[0].mxu0 %v506
  %v639 = vpop.f32.mrb[0].mxu0
  %v640 = vadd.f32 0.0, %v639
  %v641 = vpop.f32.mrb[0].mxu0
  %642 = vmatprep.mubr.f32.mxu0 0.0
  %643 = vmatmul.mubr.f32.gmra.mrb[0].mxu0 %v509
  %v644 = vpop.f32.mrb[0].mxu0
  %v645 = vadd.f32 0.0, %v644
  %v646 = vpop.f32.mrb[0].mxu0
  %647 = vmatprep.mubr.f32.mxu0 0.0
  %648 = vmatmul.mubr.f32.gmra.mrb[0].mxu0 %v512
  %v649 = vpop.f32.mrb[0].mxu0
  %v650 = vadd.f32 0.0, %v649
  %v651 = vpop.f32.mrb[0].mxu0
  %652 = vmatprep.mubr.f32.mxu0 0.0
  %653 = vmatmul.mubr.f32.gmra.mrb[0].mxu0 %v515
  %v654 = vpop.f32.mrb[0].mxu0
  %v655 = vadd.f32 0.0, %v654
  %v656 = vpop.f32.mrb[0].mxu0
  %657 = vmatprep.mubr.f32.mxu0 0.0
  %658 = vmatmul.mubr.f32.gmra.mrb[0].mxu0 %v518
  %v659 = vpop.f32.mrb[0].mxu0
  %v660 = vadd.f32 0.0, %v659
  %v661 = vpop.f32.mrb[0].mxu0
  %662 = vmatprep.mubr.f32.mxu0 0.0
  %663 = vmatmul.mubr.f32.gmra.mrb[0].mxu0 %v521
  %v664 = vpop.f32.mrb[0].mxu0
  %v665 = vadd.f32 0.0, %v664
  %v666 = vpop.f32.mrb[0].mxu0
  %667 = vmatprep.mubr.f32.mxu0 0.0
  %668 = vmatmul.mubr.f32.gmra.mrb[0].mxu0 %v524
  %v669 = vpop.f32.mrb[0].mxu0
  %v670 = vadd.f32 0.0, %v669
  %v671 = vpop.f32.mrb[0].mxu0
  %672 = vmatprep.mubr.f32.mxu0 0.0
  %673 = vmatmul.mubr.f32.gmra.mrb[0].mxu0 %v527
  %v674 = vpop.f32.mrb[0].mxu0
  %v675 = vadd.f32 0.0, %v674
  %v676 = vpop.f32.mrb[0].mxu0
  %677 = vdwg.mxu0
  %v679 = vsel %vm480, %v464, 0
  %v682 = vsel %vm480, %v465, 0
  %v685 = vsel %vm480, %v466, 0
  %v688 = vsel %vm480, %v467, 0
  %v691 = vsel %vm480, %v468, 0
  %v694 = vsel %vm480, %v469, 0
  %v697 = vsel %vm480, %v470, 0
  %v700 = vsel %vm480, %v471, 0
  %v703 = vsel %vm480, %v472, 0
  %v706 = vsel %vm480, %v473, 0
  %v709 = vsel %vm480, %v474, 0
  %v712 = vsel %vm480, %v475, 0
  %v715 = vsel %vm480, %v476, 0
  %v718 = vsel %vm480, %v477, 0
  %v721 = vsel %vm480, %v478, 0
  %v724 = vsel %vm480, %v479, 0
  %v727 = vsel %vm529, %v220, 0
  %729 = vmatprep.subr.mxu0 0.0
  %730 = vmatpush1.msra.mxu0 %v727
  %731 = vmatprep.subr.mxu0 0.0
  %732 = vmatpush1.msra.mxu0 0.0
  %733 = vmatprep.subr.mxu0 0.0
  %734 = vmatpush1.msra.mxu0 0.0
  %735 = vmatprep.subr.mxu0 0.0
  %736 = vmatpush1.msra.mxu0 0.0
  %737 = vmatprep.subr.mxu0 0.0
  %738 = vmatpush1.msra.mxu0 0.0
  %739 = vmatprep.subr.mxu0 0.0
  %740 = vmatpush1.msra.mxu0 0.0
  %741 = vmatprep.subr.mxu0 0.0
  %742 = vmatpush1.msra.mxu0 0.0
  %743 = vmatprep.subr.mxu0 0.0
  %744 = vmatpush1.msra.mxu0 0.0
  %745 = vmatprep.subr.mxu0 0.0
  %746 = vmatpush1.msra.mxu0 0.0
  %747 = vmatprep.subr.mxu0 0.0
  %748 = vmatpush1.msra.mxu0 0.0
  %749 = vmatprep.subr.mxu0 0.0
  %750 = vmatpush1.msra.mxu0 0.0
  %751 = vmatprep.subr.mxu0 0.0
  %752 = vmatpush1.msra.mxu0 0.0
  %753 = vmatprep.subr.mxu0 0.0
  %754 = vmatpush1.msra.mxu0 0.0
  %755 = vmatprep.subr.mxu0 0.0
  %756 = vmatpush1.msra.mxu0 0.0
  %757 = vmatprep.subr.mxu0 0.0
  %758 = vmatpush1.msra.mxu0 0.0
  %759 = vmatprep.subr.mxu0 0.0
  %760 = vmatpush1.msra.mxu0 0.0
  %761 = vmatprep.subr.mxu0 0.0
  %762 = vmatpush1.msra.mxu0 0.0
  %763 = vmatprep.subr.mxu0 0.0
  %764 = vmatpush1.msra.mxu0 0.0
  %765 = vmatprep.subr.mxu0 0.0
  %766 = vmatpush1.msra.mxu0 0.0
  %767 = vmatprep.subr.mxu0 0.0
  %768 = vmatpush1.msra.mxu0 0.0
  %769 = vmatprep.subr.mxu0 0.0
  %770 = vmatpush1.msra.mxu0 0.0
  %771 = vmatprep.subr.mxu0 0.0
  %772 = vmatpush1.msra.mxu0 0.0
  %773 = vmatprep.subr.mxu0 0.0
  %774 = vmatpush1.msra.mxu0 0.0
  %775 = vmatprep.subr.mxu0 0.0
  %776 = vmatpush1.msra.mxu0 0.0
  %777 = vmatprep.subr.mxu0 0.0
  %778 = vmatpush1.msra.mxu0 0.0
  %779 = vmatprep.subr.mxu0 0.0
  %780 = vmatpush1.msra.mxu0 0.0
  %781 = vmatprep.subr.mxu0 0.0
  %782 = vmatpush1.msra.mxu0 0.0
  %783 = vmatprep.subr.mxu0 0.0
  %784 = vmatpush1.msra.mxu0 0.0
  %785 = vmatprep.subr.mxu0 0.0
  %786 = vmatpush1.msra.mxu0 0.0
  %787 = vmatprep.subr.mxu0 0.0
  %788 = vmatpush1.msra.mxu0 0.0
  %789 = vmatprep.subr.mxu0 0.0
  %790 = vmatpush1.msra.mxu0 0.0
  %791 = vmatprep.subr.mxu0 0.0
  %792 = vmatpush1.msra.mxu0 0.0
  %793 = vmatprep.mubr.f32.mxu0 0.0
  %794 = vmatmul.mubr.f32.gmra.mrb[0].mxu0 %v679
  %v795 = vpop.f32.mrb[0].mxu0
  %v796 = vadd.f32 %v600, %v795
  %v797 = vpop.f32.mrb[0].mxu0
  %798 = vmatprep.mubr.f32.mxu0 0.0
  %799 = vmatmul.mubr.f32.gmra.mrb[0].mxu0 %v682
  %v800 = vpop.f32.mrb[0].mxu0
  %v801 = vadd.f32 %v605, %v800
  %v802 = vpop.f32.mrb[0].mxu0
  %803 = vmatprep.mubr.f32.mxu0 0.0
  %804 = vmatmul.mubr.f32.gmra.mrb[0].mxu0 %v685
  %v805 = vpop.f32.mrb[0].mxu0
  %v806 = vadd.f32 %v610, %v805
  %v807 = vpop.f32.mrb[0].mxu0
  %808 = vmatprep.mubr.f32.mxu0 0.0
  %809 = vmatmul.mubr.f32.gmra.mrb[0].mxu0 %v688
  %v810 = vpop.f32.mrb[0].mxu0
  %v811 = vadd.f32 %v615, %v810
  %v812 = vpop.f32.mrb[0].mxu0
  %813 = vmatprep.mubr.f32.mxu0 0.0
  %814 = vmatmul.mubr.f32.gmra.mrb[0].mxu0 %v691
  %v815 = vpop.f32.mrb[0].mxu0
  %v816 = vadd.f32 %v620, %v815
  %v817 = vpop.f32.mrb[0].mxu0
  %818 = vmatprep.mubr.f32.mxu0 0.0
  %819 = vmatmul.mubr.f32.gmra.mrb[0].mxu0 %v694
  %v820 = vpop.f32.mrb[0].mxu0
  %v821 = vadd.f32 %v625, %v820
  %v822 = vpop.f32.mrb[0].mxu0
  %823 = vmatprep.mubr.f32.mxu0 0.0
  %824 = vmatmul.mubr.f32.gmra.mrb[0].mxu0 %v697
  %v825 = vpop.f32.mrb[0].mxu0
  %v826 = vadd.f32 %v630, %v825
  %v827 = vpop.f32.mrb[0].mxu0
  %828 = vmatprep.mubr.f32.mxu0 0.0
  %829 = vmatmul.mubr.f32.gmra.mrb[0].mxu0 %v700
  %v830 = vpop.f32.mrb[0].mxu0
  %v831 = vadd.f32 %v635, %v830
  %v832 = vpop.f32.mrb[0].mxu0
  %833 = vmatprep.mubr.f32.mxu0 0.0
  %834 = vmatmul.mubr.f32.gmra.mrb[0].mxu0 %v703
  %v835 = vpop.f32.mrb[0].mxu0
  %v836 = vadd.f32 %v640, %v835
  %v837 = vpop.f32.mrb[0].mxu0
  %838 = vmatprep.mubr.f32.mxu0 0.0
  %839 = vmatmul.mubr.f32.gmra.mrb[0].mxu0 %v706
  %v840 = vpop.f32.mrb[0].mxu0
  %v841 = vadd.f32 %v645, %v840
  %v842 = vpop.f32.mrb[0].mxu0
  %843 = vmatprep.mubr.f32.mxu0 0.0
  %844 = vmatmul.mubr.f32.gmra.mrb[0].mxu0 %v709
  %v845 = vpop.f32.mrb[0].mxu0
  %v846 = vadd.f32 %v650, %v845
  %v847 = vpop.f32.mrb[0].mxu0
  %848 = vmatprep.mubr.f32.mxu0 0.0
  %849 = vmatmul.mubr.f32.gmra.mrb[0].mxu0 %v712
  %v850 = vpop.f32.mrb[0].mxu0
  %v851 = vadd.f32 %v655, %v850
  %v852 = vpop.f32.mrb[0].mxu0
  %853 = vmatprep.mubr.f32.mxu0 0.0
  %854 = vmatmul.mubr.f32.gmra.mrb[0].mxu0 %v715
  %v855 = vpop.f32.mrb[0].mxu0
  %v856 = vadd.f32 %v660, %v855
  %v857 = vpop.f32.mrb[0].mxu0
  %858 = vmatprep.mubr.f32.mxu0 0.0
  %859 = vmatmul.mubr.f32.gmra.mrb[0].mxu0 %v718
  %v860 = vpop.f32.mrb[0].mxu0
  %v861 = vadd.f32 %v665, %v860
  %v862 = vpop.f32.mrb[0].mxu0
  %863 = vmatprep.mubr.f32.mxu0 0.0
  %864 = vmatmul.mubr.f32.gmra.mrb[0].mxu0 %v721
  %v865 = vpop.f32.mrb[0].mxu0
  %v866 = vadd.f32 %v670, %v865
  %v867 = vpop.f32.mrb[0].mxu0
  %868 = vmatprep.mubr.f32.mxu0 0.0
  %869 = vmatmul.mubr.f32.gmra.mrb[0].mxu0 %v724
  %v870 = vpop.f32.mrb[0].mxu0
  %v871 = vadd.f32 %v675, %v870
  %v872 = vpop.f32.mrb[0].mxu0
  %873 = vdwg.mxu0
  %v875 = vlaneseq
  %v876 = vshrl.u32 %v875, 7
  %v877 = vsub.s32 0, %v876
  %v878 = vrot.slane %v222, %v877
  %v880 = vadd.f32 %v796, %v878
  %v881 = vadd.f32 %v801, %v878
  %v882 = vadd.f32 %v806, %v878
  %v883 = vadd.f32 %v811, %v878
  %v884 = vadd.f32 %v816, %v878
  %v885 = vadd.f32 %v821, %v878
  %v886 = vadd.f32 %v826, %v878
  %v887 = vadd.f32 %v831, %v878
  %v888 = vadd.f32 %v836, %v878
  %v889 = vadd.f32 %v841, %v878
  %v890 = vadd.f32 %v846, %v878
  %v891 = vadd.f32 %v851, %v878
  %v892 = vadd.f32 %v856, %v878
  %v893 = vadd.f32 %v861, %v878
  %v894 = vadd.f32 %v866, %v878
  %v895 = vadd.f32 %v871, %v878
  %v896 = vmax.f32 %v880, 0.0
  %v897 = vmax.f32 %v881, 0.0
  %v898 = vmax.f32 %v882, 0.0
  %v899 = vmax.f32 %v883, 0.0
  %v900 = vmax.f32 %v884, 0.0
  %v901 = vmax.f32 %v885, 0.0
  %v902 = vmax.f32 %v886, 0.0
  %v903 = vmax.f32 %v887, 0.0
  %v904 = vmax.f32 %v888, 0.0
  %v905 = vmax.f32 %v889, 0.0
  %v906 = vmax.f32 %v890, 0.0
  %v907 = vmax.f32 %v891, 0.0
  %v908 = vmax.f32 %v892, 0.0
  %v909 = vmax.f32 %v893, 0.0
  %v910 = vmax.f32 %v894, 0.0
  %v911 = vmax.f32 %v895, 0.0
  %v912 = vld [vmem:[%s7] sm:$0xff]
  %v913 = vld [vmem:[%s7 + $0x8] sm:$0xff]
  %v914 = vld [vmem:[%s7 + $0x10] sm:$0xff]
  %v915 = vld [vmem:[%s7 + $0x18] sm:$0xff]
  %v916 = vld [vmem:[%s8] sm:$0xff]
  %v917 = vld [vmem:[%s8 + $0x8] sm:$0xff]
  %v918 = vld [vmem:[%s8 + $0x10] sm:$0xff]
  %v919 = vld [vmem:[%s8 + $0x18] sm:$0xff]
  %v920 = vld [vmem:[%s9] sm:$0x1]
  %v921 = vmul.f32 %v896, %v226
  %v922 = vmul.f32 %v897, %v231
  %v923 = vmul.f32 %v898, %v236
  %v924 = vmul.f32 %v899, %v241
  %v925 = vmul.f32 %v900, %v246
  %v926 = vmul.f32 %v901, %v251
  %v927 = vmul.f32 %v902, %v256
  %v928 = vmul.f32 %v903, %v261
  %v929 = vmul.f32 %v904, %v266
  %v930 = vmul.f32 %v905, %v271
  %v931 = vmul.f32 %v906, %v276
  %v932 = vmul.f32 %v907, %v281
  %v933 = vmul.f32 %v908, %v286
  %v934 = vmul.f32 %v909, %v291
  %v935 = vmul.f32 %v910, %v296
  %v936 = vmul.f32 %v911, %v301
  %937 = vmatprep.subr.mxu0 0.0
  %938 = vmatpush1.msra.mxu0 %v921
  %939 = vmatprep.subr.mxu0 0.0
  %940 = vmatpush1.msra.mxu0 %v922
  %941 = vmatprep.subr.mxu0 0.0
  %942 = vmatpush1.msra.mxu0 %v923
  %943 = vmatprep.subr.mxu0 0.0
  %944 = vmatpush1.msra.mxu0 %v924
  %945 = vmatprep.subr.mxu0 0.0
  %946 = vmatpush1.msra.mxu0 %v925
  %947 = vmatprep.subr.mxu0 0.0
  %948 = vmatpush1.msra.mxu0 %v926
  %949 = vmatprep.subr.mxu0 0.0
  %950 = vmatpush1.msra.mxu0 %v927
  %951 = vmatprep.subr.mxu0 0.0
  %952 = vmatpush1.msra.mxu0 %v928
  %953 = vmatprep.subr.mxu0 0.0
  %954 = vmatpush1.msra.mxu0 %v929
  %955 = vmatprep.subr.mxu0 0.0
  %956 = vmatpush1.msra.mxu0 %v930
  %957 = vmatprep.subr.mxu0 0.0
  %958 = vmatpush1.msra.mxu0 %v931
  %959 = vmatprep.subr.mxu0 0.0
  %960 = vmatpush1.msra.mxu0 %v932
  %961 = vmatprep.subr.mxu0 0.0
  %962 = vmatpush1.msra.mxu0 %v933
  %963 = vmatprep.subr.mxu0 0.0
  %964 = vmatpush1.msra.mxu0 %v934
  %965 = vmatprep.subr.mxu0 0.0
  %966 = vmatpush1.msra.mxu0 %v935
  %967 = vmatprep.subr.mxu0 0.0
  %968 = vmatpush1.msra.mxu0 %v936
  %969 = vmatprep.subr.mxu0 0.0
  %970 = vmatpush1.msra.mxu0 0.0
  %971 = vmatprep.subr.mxu0 0.0
  %972 = vmatpush1.msra.mxu0 0.0
  %973 = vmatprep.subr.mxu0 0.0
  %974 = vmatpush1.msra.mxu0 0.0
  %975 = vmatprep.subr.mxu0 0.0
  %976 = vmatpush1.msra.mxu0 0.0
  %977 = vmatprep.subr.mxu0 0.0
  %978 = vmatpush1.msra.mxu0 0.0
  %979 = vmatprep.subr.mxu0 0.0
  %980 = vmatpush1.msra.mxu0 0.0
  %981 = vmatprep.subr.mxu0 0.0
  %982 = vmatpush1.msra.mxu0 0.0
  %983 = vmatprep.subr.mxu0 0.0
  %984 = vmatpush1.msra.mxu0 0.0
  %985 = vmatprep.subr.mxu0 0.0
  %986 = vmatpush1.msra.mxu0 0.0
  %987 = vmatprep.subr.mxu0 0.0
  %988 = vmatpush1.msra.mxu0 0.0
  %989 = vmatprep.subr.mxu0 0.0
  %990 = vmatpush1.msra.mxu0 0.0
  %991 = vmatprep.subr.mxu0 0.0
  %992 = vmatpush1.msra.mxu0 0.0
  %993 = vmatprep.subr.mxu0 0.0
  %994 = vmatpush1.msra.mxu0 0.0
  %995 = vmatprep.subr.mxu0 0.0
  %996 = vmatpush1.msra.mxu0 0.0
  %997 = vmatprep.subr.mxu0 0.0
  %998 = vmatpush1.msra.mxu0 0.0
  %999 = vmatprep.subr.mxu0 0.0
  %1000 = vmatpush1.msra.mxu0 0.0
  %1001 = vmatprep.mubr.f32.mxu0 0.0
  %1002 = vmatmul.mubr.f32.gmra.mrb[0].mxu0 %v53
  %v1003 = vpop.f32.mrb[0].mxu0
  %v1004 = vadd.f32 0.0, %v1003
  %v1005 = vpop.f32.mrb[0].mxu0
  %1006 = vmatprep.mubr.f32.mxu0 0.0
  %1007 = vmatmul.mubr.f32.gmra.mrb[0].mxu0 %v54
  %v1008 = vpop.f32.mrb[0].mxu0
  %v1009 = vadd.f32 0.0, %v1008
  %v1010 = vpop.f32.mrb[0].mxu0
  %1011 = vmatprep.mubr.f32.mxu0 0.0
  %1012 = vmatmul.mubr.f32.gmra.mrb[0].mxu0 %v55
  %v1013 = vpop.f32.mrb[0].mxu0
  %v1014 = vadd.f32 0.0, %v1013
  %v1015 = vpop.f32.mrb[0].mxu0
  %1016 = vmatprep.mubr.f32.mxu0 0.0
  %1017 = vmatmul.mubr.f32.gmra.mrb[0].mxu0 %v56
  %v1018 = vpop.f32.mrb[0].mxu0
  %v1019 = vadd.f32 0.0, %v1018
  %v1020 = vpop.f32.mrb[0].mxu0
  %1021 = vmatprep.mubr.f32.mxu0 0.0
  %1022 = vmatmul.mubr.f32.gmra.mrb[0].mxu0 %v57
  %v1023 = vpop.f32.mrb[0].mxu0
  %v1024 = vadd.f32 0.0, %v1023
  %v1025 = vpop.f32.mrb[0].mxu0
  %1026 = vmatprep.mubr.f32.mxu0 0.0
  %1027 = vmatmul.mubr.f32.gmra.mrb[0].mxu0 %v58
  %v1028 = vpop.f32.mrb[0].mxu0
  %v1029 = vadd.f32 0.0, %v1028
  %v1030 = vpop.f32.mrb[0].mxu0
  %1031 = vmatprep.mubr.f32.mxu0 0.0
  %1032 = vmatmul.mubr.f32.gmra.mrb[0].mxu0 %v59
  %v1033 = vpop.f32.mrb[0].mxu0
  %v1034 = vadd.f32 0.0, %v1033
  %v1035 = vpop.f32.mrb[0].mxu0
  %1036 = vmatprep.mubr.f32.mxu0 0.0
  %1037 = vmatmul.mubr.f32.gmra.mrb[0].mxu0 %v60
  %v1038 = vpop.f32.mrb[0].mxu0
  %v1039 = vadd.f32 0.0, %v1038
  %v1040 = vpop.f32.mrb[0].mxu0
  %1041 = vmatprep.mubr.f32.mxu0 0.0
  %1042 = vmatmul.mubr.f32.gmra.mrb[0].mxu0 %v61
  %v1043 = vpop.f32.mrb[0].mxu0
  %v1044 = vadd.f32 0.0, %v1043
  %v1045 = vpop.f32.mrb[0].mxu0
  %1046 = vmatprep.mubr.f32.mxu0 0.0
  %1047 = vmatmul.mubr.f32.gmra.mrb[0].mxu0 %v62
  %v1048 = vpop.f32.mrb[0].mxu0
  %v1049 = vadd.f32 0.0, %v1048
  %v1050 = vpop.f32.mrb[0].mxu0
  %1051 = vmatprep.mubr.f32.mxu0 0.0
  %1052 = vmatmul.mubr.f32.gmra.mrb[0].mxu0 %v63
  %v1053 = vpop.f32.mrb[0].mxu0
  %v1054 = vadd.f32 0.0, %v1053
  %v1055 = vpop.f32.mrb[0].mxu0
  %1056 = vmatprep.mubr.f32.mxu0 0.0
  %1057 = vmatmul.mubr.f32.gmra.mrb[0].mxu0 %v64
  %v1058 = vpop.f32.mrb[0].mxu0
  %v1059 = vadd.f32 0.0, %v1058
  %v1060 = vpop.f32.mrb[0].mxu0
  %1061 = vmatprep.mubr.f32.mxu0 0.0
  %1062 = vmatmul.mubr.f32.gmra.mrb[0].mxu0 %v65
  %v1063 = vpop.f32.mrb[0].mxu0
  %v1064 = vadd.f32 0.0, %v1063
  %v1065 = vpop.f32.mrb[0].mxu0
  %1066 = vmatprep.mubr.f32.mxu0 0.0
  %1067 = vmatmul.mubr.f32.gmra.mrb[0].mxu0 %v66
  %v1068 = vpop.f32.mrb[0].mxu0
  %v1069 = vadd.f32 0.0, %v1068
  %v1070 = vpop.f32.mrb[0].mxu0
  %1071 = vmatprep.mubr.f32.mxu0 0.0
  %1072 = vmatmul.mubr.f32.gmra.mrb[0].mxu0 %v67
  %v1073 = vpop.f32.mrb[0].mxu0
  %v1074 = vadd.f32 0.0, %v1073
  %v1075 = vpop.f32.mrb[0].mxu0
  %1076 = vmatprep.mubr.f32.mxu0 0.0
  %1077 = vmatmul.mubr.f32.gmra.mrb[0].mxu0 %v68
  %v1078 = vpop.f32.mrb[0].mxu0
  %v1079 = vadd.f32 0.0, %v1078
  %v1080 = vpop.f32.mrb[0].mxu0
  %1081 = vdwg.mxu0
  %v1082 = vmul.f32 %v1004, %v172
  %v1083 = vmul.f32 %v1009, %v173
  %v1084 = vmul.f32 %v1014, %v174
  %v1085 = vmul.f32 %v1019, %v175
  %v1086 = vmul.f32 %v1024, %v176
  %v1087 = vmul.f32 %v1029, %v177
  %v1088 = vmul.f32 %v1034, %v178
  %v1089 = vmul.f32 %v1039, %v179
  %v1090 = vmul.f32 %v1044, %v180
  %v1091 = vmul.f32 %v1049, %v181
  %v1092 = vmul.f32 %v1054, %v182
  %v1093 = vmul.f32 %v1059, %v183
  %v1094 = vmul.f32 %v1064, %v184
  %v1095 = vmul.f32 %v1069, %v185
  %v1096 = vmul.f32 %v1074, %v186
  %v1097 = vmul.f32 %v1079, %v187
  %vm1098 = vcmask 261120
  %v1100 = vsel %vm1098, %v896, 0
  %v1103 = vsel %vm1098, %v897, 0
  %v1106 = vsel %vm1098, %v898, 0
  %v1109 = vsel %vm1098, %v899, 0
  %v1112 = vsel %vm1098, %v900, 0
  %v1115 = vsel %vm1098, %v901, 0
  %v1118 = vsel %vm1098, %v902, 0
  %v1121 = vsel %vm1098, %v903, 0
  %v1124 = vsel %vm1098, %v904, 0
  %v1127 = vsel %vm1098, %v905, 0
  %v1130 = vsel %vm1098, %v906, 0
  %v1133 = vsel %vm1098, %v907, 0
  %v1136 = vsel %vm1098, %v908, 0
  %v1139 = vsel %vm1098, %v909, 0
  %v1142 = vsel %vm1098, %v910, 0
  %v1145 = vsel %vm1098, %v911, 0
  %1147 = vmatprep.subr.mxu0 0.0
  %1148 = vmatpush1.msra.mxu0 %v916
  %1149 = vmatprep.subr.mxu0 0.0
  %1150 = vmatpush1.msra.mxu0 %v917
  %1151 = vmatprep.subr.mxu0 0.0
  %1152 = vmatpush1.msra.mxu0 %v918
  %1153 = vmatprep.subr.mxu0 0.0
  %1154 = vmatpush1.msra.mxu0 %v919
  %1155 = vmatprep.subr.mxu0 0.0
  %1156 = vmatpush1.msra.mxu0 0.0
  %1157 = vmatprep.subr.mxu0 0.0
  %1158 = vmatpush1.msra.mxu0 0.0
  %1159 = vmatprep.subr.mxu0 0.0
  %1160 = vmatpush1.msra.mxu0 0.0
  %1161 = vmatprep.subr.mxu0 0.0
  %1162 = vmatpush1.msra.mxu0 0.0
  %1163 = vmatprep.subr.mxu0 0.0
  %1164 = vmatpush1.msra.mxu0 0.0
  %1165 = vmatprep.subr.mxu0 0.0
  %1166 = vmatpush1.msra.mxu0 0.0
  %1167 = vmatprep.subr.mxu0 0.0
  %1168 = vmatpush1.msra.mxu0 0.0
  %1169 = vmatprep.subr.mxu0 0.0
  %1170 = vmatpush1.msra.mxu0 0.0
  %1171 = vmatprep.subr.mxu0 0.0
  %1172 = vmatpush1.msra.mxu0 0.0
  %1173 = vmatprep.subr.mxu0 0.0
  %1174 = vmatpush1.msra.mxu0 0.0
  %1175 = vmatprep.subr.mxu0 0.0
  %1176 = vmatpush1.msra.mxu0 0.0
  %1177 = vmatprep.subr.mxu0 0.0
  %1178 = vmatpush1.msra.mxu0 0.0
  %1179 = vmatprep.subr.mxu0 0.0
  %1180 = vmatpush1.msra.mxu0 0.0
  %1181 = vmatprep.subr.mxu0 0.0
  %1182 = vmatpush1.msra.mxu0 0.0
  %1183 = vmatprep.subr.mxu0 0.0
  %1184 = vmatpush1.msra.mxu0 0.0
  %1185 = vmatprep.subr.mxu0 0.0
  %1186 = vmatpush1.msra.mxu0 0.0
  %1187 = vmatprep.subr.mxu0 0.0
  %1188 = vmatpush1.msra.mxu0 0.0
  %1189 = vmatprep.subr.mxu0 0.0
  %1190 = vmatpush1.msra.mxu0 0.0
  %1191 = vmatprep.subr.mxu0 0.0
  %1192 = vmatpush1.msra.mxu0 0.0
  %1193 = vmatprep.subr.mxu0 0.0
  %1194 = vmatpush1.msra.mxu0 0.0
  %1195 = vmatprep.subr.mxu0 0.0
  %1196 = vmatpush1.msra.mxu0 0.0
  %1197 = vmatprep.subr.mxu0 0.0
  %1198 = vmatpush1.msra.mxu0 0.0
  %1199 = vmatprep.subr.mxu0 0.0
  %1200 = vmatpush1.msra.mxu0 0.0
  %1201 = vmatprep.subr.mxu0 0.0
  %1202 = vmatpush1.msra.mxu0 0.0
  %1203 = vmatprep.subr.mxu0 0.0
  %1204 = vmatpush1.msra.mxu0 0.0
  %1205 = vmatprep.subr.mxu0 0.0
  %1206 = vmatpush1.msra.mxu0 0.0
  %1207 = vmatprep.subr.mxu0 0.0
  %1208 = vmatpush1.msra.mxu0 0.0
  %1209 = vmatprep.subr.mxu0 0.0
  %1210 = vmatpush1.msra.mxu0 0.0
  %1211 = vmatprep.mubr.f32.mxu0 0.0
  %1212 = vmatmul.mubr.f32.gmra.mrb[0].mxu0 %v1100
  %v1213 = vpop.f32.mrb[0].mxu0
  %v1214 = vadd.f32 0.0, %v1213
  %v1215 = vpop.f32.mrb[0].mxu0
  %1216 = vmatprep.mubr.f32.mxu0 0.0
  %1217 = vmatmul.mubr.f32.gmra.mrb[0].mxu0 %v1103
  %v1218 = vpop.f32.mrb[0].mxu0
  %v1219 = vadd.f32 0.0, %v1218
  %v1220 = vpop.f32.mrb[0].mxu0
  %1221 = vmatprep.mubr.f32.mxu0 0.0
  %1222 = vmatmul.mubr.f32.gmra.mrb[0].mxu0 %v1106
  %v1223 = vpop.f32.mrb[0].mxu0
  %v1224 = vadd.f32 0.0, %v1223
  %v1225 = vpop.f32.mrb[0].mxu0
  %1226 = vmatprep.mubr.f32.mxu0 0.0
  %1227 = vmatmul.mubr.f32.gmra.mrb[0].mxu0 %v1109
  %v1228 = vpop.f32.mrb[0].mxu0
  %v1229 = vadd.f32 0.0, %v1228
  %v1230 = vpop.f32.mrb[0].mxu0
  %1231 = vmatprep.mubr.f32.mxu0 0.0
  %1232 = vmatmul.mubr.f32.gmra.mrb[0].mxu0 %v1112
  %v1233 = vpop.f32.mrb[0].mxu0
  %v1234 = vadd.f32 0.0, %v1233
  %v1235 = vpop.f32.mrb[0].mxu0
  %1236 = vmatprep.mubr.f32.mxu0 0.0
  %1237 = vmatmul.mubr.f32.gmra.mrb[0].mxu0 %v1115
  %v1238 = vpop.f32.mrb[0].mxu0
  %v1239 = vadd.f32 0.0, %v1238
  %v1240 = vpop.f32.mrb[0].mxu0
  %1241 = vmatprep.mubr.f32.mxu0 0.0
  %1242 = vmatmul.mubr.f32.gmra.mrb[0].mxu0 %v1118
  %v1243 = vpop.f32.mrb[0].mxu0
  %v1244 = vadd.f32 0.0, %v1243
  %v1245 = vpop.f32.mrb[0].mxu0
  %1246 = vmatprep.mubr.f32.mxu0 0.0
  %1247 = vmatmul.mubr.f32.gmra.mrb[0].mxu0 %v1121
  %v1248 = vpop.f32.mrb[0].mxu0
  %v1249 = vadd.f32 0.0, %v1248
  %v1250 = vpop.f32.mrb[0].mxu0
  %1251 = vmatprep.mubr.f32.mxu0 0.0
  %1252 = vmatmul.mubr.f32.gmra.mrb[0].mxu0 %v1124
  %v1253 = vpop.f32.mrb[0].mxu0
  %v1254 = vadd.f32 0.0, %v1253
  %v1255 = vpop.f32.mrb[0].mxu0
  %1256 = vmatprep.mubr.f32.mxu0 0.0
  %1257 = vmatmul.mubr.f32.gmra.mrb[0].mxu0 %v1127
  %v1258 = vpop.f32.mrb[0].mxu0
  %v1259 = vadd.f32 0.0, %v1258
  %v1260 = vpop.f32.mrb[0].mxu0
  %1261 = vmatprep.mubr.f32.mxu0 0.0
  %1262 = vmatmul.mubr.f32.gmra.mrb[0].mxu0 %v1130
  %v1263 = vpop.f32.mrb[0].mxu0
  %v1264 = vadd.f32 0.0, %v1263
  %v1265 = vpop.f32.mrb[0].mxu0
  %1266 = vmatprep.mubr.f32.mxu0 0.0
  %1267 = vmatmul.mubr.f32.gmra.mrb[0].mxu0 %v1133
  %v1268 = vpop.f32.mrb[0].mxu0
  %v1269 = vadd.f32 0.0, %v1268
  %v1270 = vpop.f32.mrb[0].mxu0
  %1271 = vmatprep.mubr.f32.mxu0 0.0
  %1272 = vmatmul.mubr.f32.gmra.mrb[0].mxu0 %v1136
  %v1273 = vpop.f32.mrb[0].mxu0
  %v1274 = vadd.f32 0.0, %v1273
  %v1275 = vpop.f32.mrb[0].mxu0
  %1276 = vmatprep.mubr.f32.mxu0 0.0
  %1277 = vmatmul.mubr.f32.gmra.mrb[0].mxu0 %v1139
  %v1278 = vpop.f32.mrb[0].mxu0
  %v1279 = vadd.f32 0.0, %v1278
  %v1280 = vpop.f32.mrb[0].mxu0
  %1281 = vmatprep.mubr.f32.mxu0 0.0
  %1282 = vmatmul.mubr.f32.gmra.mrb[0].mxu0 %v1142
  %v1283 = vpop.f32.mrb[0].mxu0
  %v1284 = vadd.f32 0.0, %v1283
  %v1285 = vpop.f32.mrb[0].mxu0
  %1286 = vmatprep.mubr.f32.mxu0 0.0
  %1287 = vmatmul.mubr.f32.gmra.mrb[0].mxu0 %v1145
  %v1288 = vpop.f32.mrb[0].mxu0
  %v1289 = vadd.f32 0.0, %v1288
  %v1290 = vpop.f32.mrb[0].mxu0
  %1291 = vdwg.mxu0
  %v1293 = vsel %vm1098, %v1082, 0
  %v1296 = vsel %vm1098, %v1083, 0
  %v1299 = vsel %vm1098, %v1084, 0
  %v1302 = vsel %vm1098, %v1085, 0
  %v1305 = vsel %vm1098, %v1086, 0
  %v1308 = vsel %vm1098, %v1087, 0
  %v1311 = vsel %vm1098, %v1088, 0
  %v1314 = vsel %vm1098, %v1089, 0
  %v1317 = vsel %vm1098, %v1090, 0
  %v1320 = vsel %vm1098, %v1091, 0
  %v1323 = vsel %vm1098, %v1092, 0
  %v1326 = vsel %vm1098, %v1093, 0
  %v1329 = vsel %vm1098, %v1094, 0
  %v1332 = vsel %vm1098, %v1095, 0
  %v1335 = vsel %vm1098, %v1096, 0
  %v1338 = vsel %vm1098, %v1097, 0
  %1340 = vmatprep.subr.mxu0 0.0
  %1341 = vmatpush1.msra.mxu0 %v912
  %1342 = vmatprep.subr.mxu0 0.0
  %1343 = vmatpush1.msra.mxu0 %v913
  %1344 = vmatprep.subr.mxu0 0.0
  %1345 = vmatpush1.msra.mxu0 %v914
  %1346 = vmatprep.subr.mxu0 0.0
  %1347 = vmatpush1.msra.mxu0 %v915
  %1348 = vmatprep.subr.mxu0 0.0
  %1349 = vmatpush1.msra.mxu0 0.0
  %1350 = vmatprep.subr.mxu0 0.0
  %1351 = vmatpush1.msra.mxu0 0.0
  %1352 = vmatprep.subr.mxu0 0.0
  %1353 = vmatpush1.msra.mxu0 0.0
  %1354 = vmatprep.subr.mxu0 0.0
  %1355 = vmatpush1.msra.mxu0 0.0
  %1356 = vmatprep.subr.mxu0 0.0
  %1357 = vmatpush1.msra.mxu0 0.0
  %1358 = vmatprep.subr.mxu0 0.0
  %1359 = vmatpush1.msra.mxu0 0.0
  %1360 = vmatprep.subr.mxu0 0.0
  %1361 = vmatpush1.msra.mxu0 0.0
  %1362 = vmatprep.subr.mxu0 0.0
  %1363 = vmatpush1.msra.mxu0 0.0
  %1364 = vmatprep.subr.mxu0 0.0
  %1365 = vmatpush1.msra.mxu0 0.0
  %1366 = vmatprep.subr.mxu0 0.0
  %1367 = vmatpush1.msra.mxu0 0.0
  %1368 = vmatprep.subr.mxu0 0.0
  %1369 = vmatpush1.msra.mxu0 0.0
  %1370 = vmatprep.subr.mxu0 0.0
  %1371 = vmatpush1.msra.mxu0 0.0
  %1372 = vmatprep.subr.mxu0 0.0
  %1373 = vmatpush1.msra.mxu0 0.0
  %1374 = vmatprep.subr.mxu0 0.0
  %1375 = vmatpush1.msra.mxu0 0.0
  %1376 = vmatprep.subr.mxu0 0.0
  %1377 = vmatpush1.msra.mxu0 0.0
  %1378 = vmatprep.subr.mxu0 0.0
  %1379 = vmatpush1.msra.mxu0 0.0
  %1380 = vmatprep.subr.mxu0 0.0
  %1381 = vmatpush1.msra.mxu0 0.0
  %1382 = vmatprep.subr.mxu0 0.0
  %1383 = vmatpush1.msra.mxu0 0.0
  %1384 = vmatprep.subr.mxu0 0.0
  %1385 = vmatpush1.msra.mxu0 0.0
  %1386 = vmatprep.subr.mxu0 0.0
  %1387 = vmatpush1.msra.mxu0 0.0
  %1388 = vmatprep.subr.mxu0 0.0
  %1389 = vmatpush1.msra.mxu0 0.0
  %1390 = vmatprep.subr.mxu0 0.0
  %1391 = vmatpush1.msra.mxu0 0.0
  %1392 = vmatprep.subr.mxu0 0.0
  %1393 = vmatpush1.msra.mxu0 0.0
  %1394 = vmatprep.subr.mxu0 0.0
  %1395 = vmatpush1.msra.mxu0 0.0
  %1396 = vmatprep.subr.mxu0 0.0
  %1397 = vmatpush1.msra.mxu0 0.0
  %1398 = vmatprep.subr.mxu0 0.0
  %1399 = vmatpush1.msra.mxu0 0.0
  %1400 = vmatprep.subr.mxu0 0.0
  %1401 = vmatpush1.msra.mxu0 0.0
  %1402 = vmatprep.subr.mxu0 0.0
  %1403 = vmatpush1.msra.mxu0 0.0
  %1404 = vmatprep.mubr.f32.mxu0 0.0
  %1405 = vmatmul.mubr.f32.gmra.mrb[0].mxu0 %v1293
  %v1406 = vpop.f32.mrb[0].mxu0
  %v1407 = vadd.f32 %v1214, %v1406
  %v1408 = vpop.f32.mrb[0].mxu0
  %1409 = vmatprep.mubr.f32.mxu0 0.0
  %1410 = vmatmul.mubr.f32.gmra.mrb[0].mxu0 %v1296
  %v1411 = vpop.f32.mrb[0].mxu0
  %v1412 = vadd.f32 %v1219, %v1411
  %v1413 = vpop.f32.mrb[0].mxu0
  %1414 = vmatprep.mubr.f32.mxu0 0.0
  %1415 = vmatmul.mubr.f32.gmra.mrb[0].mxu0 %v1299
  %v1416 = vpop.f32.mrb[0].mxu0
  %v1417 = vadd.f32 %v1224, %v1416
  %v1418 = vpop.f32.mrb[0].mxu0
  %1419 = vmatprep.mubr.f32.mxu0 0.0
  %1420 = vmatmul.mubr.f32.gmra.mrb[0].mxu0 %v1302
  %v1421 = vpop.f32.mrb[0].mxu0
  %v1422 = vadd.f32 %v1229, %v1421
  %v1423 = vpop.f32.mrb[0].mxu0
  %1424 = vmatprep.mubr.f32.mxu0 0.0
  %1425 = vmatmul.mubr.f32.gmra.mrb[0].mxu0 %v1305
  %v1426 = vpop.f32.mrb[0].mxu0
  %v1427 = vadd.f32 %v1234, %v1426
  %v1428 = vpop.f32.mrb[0].mxu0
  %1429 = vmatprep.mubr.f32.mxu0 0.0
  %1430 = vmatmul.mubr.f32.gmra.mrb[0].mxu0 %v1308
  %v1431 = vpop.f32.mrb[0].mxu0
  %v1432 = vadd.f32 %v1239, %v1431
  %v1433 = vpop.f32.mrb[0].mxu0
  %1434 = vmatprep.mubr.f32.mxu0 0.0
  %1435 = vmatmul.mubr.f32.gmra.mrb[0].mxu0 %v1311
  %v1436 = vpop.f32.mrb[0].mxu0
  %v1437 = vadd.f32 %v1244, %v1436
  %v1438 = vpop.f32.mrb[0].mxu0
  %1439 = vmatprep.mubr.f32.mxu0 0.0
  %1440 = vmatmul.mubr.f32.gmra.mrb[0].mxu0 %v1314
  %v1441 = vpop.f32.mrb[0].mxu0
  %v1442 = vadd.f32 %v1249, %v1441
  %v1443 = vpop.f32.mrb[0].mxu0
  %1444 = vmatprep.mubr.f32.mxu0 0.0
  %1445 = vmatmul.mubr.f32.gmra.mrb[0].mxu0 %v1317
  %v1446 = vpop.f32.mrb[0].mxu0
  %v1447 = vadd.f32 %v1254, %v1446
  %v1448 = vpop.f32.mrb[0].mxu0
  %1449 = vmatprep.mubr.f32.mxu0 0.0
  %1450 = vmatmul.mubr.f32.gmra.mrb[0].mxu0 %v1320
  %v1451 = vpop.f32.mrb[0].mxu0
  %v1452 = vadd.f32 %v1259, %v1451
  %v1453 = vpop.f32.mrb[0].mxu0
  %1454 = vmatprep.mubr.f32.mxu0 0.0
  %1455 = vmatmul.mubr.f32.gmra.mrb[0].mxu0 %v1323
  %v1456 = vpop.f32.mrb[0].mxu0
  %v1457 = vadd.f32 %v1264, %v1456
  %v1458 = vpop.f32.mrb[0].mxu0
  %1459 = vmatprep.mubr.f32.mxu0 0.0
  %1460 = vmatmul.mubr.f32.gmra.mrb[0].mxu0 %v1326
  %v1461 = vpop.f32.mrb[0].mxu0
  %v1462 = vadd.f32 %v1269, %v1461
  %v1463 = vpop.f32.mrb[0].mxu0
  %1464 = vmatprep.mubr.f32.mxu0 0.0
  %1465 = vmatmul.mubr.f32.gmra.mrb[0].mxu0 %v1329
  %v1466 = vpop.f32.mrb[0].mxu0
  %v1467 = vadd.f32 %v1274, %v1466
  %v1468 = vpop.f32.mrb[0].mxu0
  %1469 = vmatprep.mubr.f32.mxu0 0.0
  %1470 = vmatmul.mubr.f32.gmra.mrb[0].mxu0 %v1332
  %v1471 = vpop.f32.mrb[0].mxu0
  %v1472 = vadd.f32 %v1279, %v1471
  %v1473 = vpop.f32.mrb[0].mxu0
  %1474 = vmatprep.mubr.f32.mxu0 0.0
  %1475 = vmatmul.mubr.f32.gmra.mrb[0].mxu0 %v1335
  %v1476 = vpop.f32.mrb[0].mxu0
  %v1477 = vadd.f32 %v1284, %v1476
  %v1478 = vpop.f32.mrb[0].mxu0
  %1479 = vmatprep.mubr.f32.mxu0 0.0
  %1480 = vmatmul.mubr.f32.gmra.mrb[0].mxu0 %v1338
  %v1481 = vpop.f32.mrb[0].mxu0
  %v1482 = vadd.f32 %v1289, %v1481
  %v1483 = vpop.f32.mrb[0].mxu0
  %1484 = vdwg.mxu0
  %v1486 = vlaneseq
  %v1487 = vshrl.u32 %v1486, 7
  %v1488 = vsub.s32 0, %v1487
  %v1489 = vrot.slane %v920, %v1488
  %v1491 = vadd.f32 %v1407, %v1489
  %v1492 = vadd.f32 %v1412, %v1489
  %v1493 = vadd.f32 %v1417, %v1489
  %v1494 = vadd.f32 %v1422, %v1489
  %v1495 = vadd.f32 %v1427, %v1489
  %v1496 = vadd.f32 %v1432, %v1489
  %v1497 = vadd.f32 %v1437, %v1489
  %v1498 = vadd.f32 %v1442, %v1489
  %v1499 = vadd.f32 %v1447, %v1489
  %v1500 = vadd.f32 %v1452, %v1489
  %v1501 = vadd.f32 %v1457, %v1489
  %v1502 = vadd.f32 %v1462, %v1489
  %v1503 = vadd.f32 %v1467, %v1489
  %v1504 = vadd.f32 %v1472, %v1489
  %v1505 = vadd.f32 %v1477, %v1489
  %v1506 = vadd.f32 %v1482, %v1489
  %v1507 = vmax.f32 %v1491, 0.0
  %v1508 = vmax.f32 %v1492, 0.0
  %v1509 = vmax.f32 %v1493, 0.0
  %v1510 = vmax.f32 %v1494, 0.0
  %v1511 = vmax.f32 %v1495, 0.0
  %v1512 = vmax.f32 %v1496, 0.0
  %v1513 = vmax.f32 %v1497, 0.0
  %v1514 = vmax.f32 %v1498, 0.0
  %v1515 = vmax.f32 %v1499, 0.0
  %v1516 = vmax.f32 %v1500, 0.0
  %v1517 = vmax.f32 %v1501, 0.0
  %v1518 = vmax.f32 %v1502, 0.0
  %v1519 = vmax.f32 %v1503, 0.0
  %v1520 = vmax.f32 %v1504, 0.0
  %v1521 = vmax.f32 %v1505, 0.0
  %v1522 = vmax.f32 %v1506, 0.0
  %v1523 = vld [vmem:[%s10] sm:$0xff]
  %v1524 = vld [vmem:[%s10 + $0x8] sm:$0xff]
  %v1525 = vld [vmem:[%s10 + $0x10] sm:$0xff]
  %v1526 = vld [vmem:[%s10 + $0x18] sm:$0xff]
  %v1527 = vld [vmem:[%s11] sm:$0xff]
  %v1528 = vld [vmem:[%s11 + $0x8] sm:$0xff]
  %v1529 = vld [vmem:[%s11 + $0x10] sm:$0xff]
  %v1530 = vld [vmem:[%s11 + $0x18] sm:$0xff]
  %v1531 = vld [vmem:[%s12] sm:$0x1]
  %v1532 = vmul.f32 %v1507, %v226
  %v1533 = vmul.f32 %v1508, %v231
  %v1534 = vmul.f32 %v1509, %v236
  %v1535 = vmul.f32 %v1510, %v241
  %v1536 = vmul.f32 %v1511, %v246
  %v1537 = vmul.f32 %v1512, %v251
  %v1538 = vmul.f32 %v1513, %v256
  %v1539 = vmul.f32 %v1514, %v261
  %v1540 = vmul.f32 %v1515, %v266
  %v1541 = vmul.f32 %v1516, %v271
  %v1542 = vmul.f32 %v1517, %v276
  %v1543 = vmul.f32 %v1518, %v281
  %v1544 = vmul.f32 %v1519, %v286
  %v1545 = vmul.f32 %v1520, %v291
  %v1546 = vmul.f32 %v1521, %v296
  %v1547 = vmul.f32 %v1522, %v301
  %1548 = vmatprep.subr.mxu0 0.0
  %1549 = vmatpush1.msra.mxu0 %v1532
  %1550 = vmatprep.subr.mxu0 0.0
  %1551 = vmatpush1.msra.mxu0 %v1533
  %1552 = vmatprep.subr.mxu0 0.0
  %1553 = vmatpush1.msra.mxu0 %v1534
  %1554 = vmatprep.subr.mxu0 0.0
  %1555 = vmatpush1.msra.mxu0 %v1535
  %1556 = vmatprep.subr.mxu0 0.0
  %1557 = vmatpush1.msra.mxu0 %v1536
  %1558 = vmatprep.subr.mxu0 0.0
  %1559 = vmatpush1.msra.mxu0 %v1537
  %1560 = vmatprep.subr.mxu0 0.0
  %1561 = vmatpush1.msra.mxu0 %v1538
  %1562 = vmatprep.subr.mxu0 0.0
  %1563 = vmatpush1.msra.mxu0 %v1539
  %1564 = vmatprep.subr.mxu0 0.0
  %1565 = vmatpush1.msra.mxu0 %v1540
  %1566 = vmatprep.subr.mxu0 0.0
  %1567 = vmatpush1.msra.mxu0 %v1541
  %1568 = vmatprep.subr.mxu0 0.0
  %1569 = vmatpush1.msra.mxu0 %v1542
  %1570 = vmatprep.subr.mxu0 0.0
  %1571 = vmatpush1.msra.mxu0 %v1543
  %1572 = vmatprep.subr.mxu0 0.0
  %1573 = vmatpush1.msra.mxu0 %v1544
  %1574 = vmatprep.subr.mxu0 0.0
  %1575 = vmatpush1.msra.mxu0 %v1545
  %1576 = vmatprep.subr.mxu0 0.0
  %1577 = vmatpush1.msra.mxu0 %v1546
  %1578 = vmatprep.subr.mxu0 0.0
  %1579 = vmatpush1.msra.mxu0 %v1547
  %1580 = vmatprep.subr.mxu0 0.0
  %1581 = vmatpush1.msra.mxu0 0.0
  %1582 = vmatprep.subr.mxu0 0.0
  %1583 = vmatpush1.msra.mxu0 0.0
  %1584 = vmatprep.subr.mxu0 0.0
  %1585 = vmatpush1.msra.mxu0 0.0
  %1586 = vmatprep.subr.mxu0 0.0
  %1587 = vmatpush1.msra.mxu0 0.0
  %1588 = vmatprep.subr.mxu0 0.0
  %1589 = vmatpush1.msra.mxu0 0.0
  %1590 = vmatprep.subr.mxu0 0.0
  %1591 = vmatpush1.msra.mxu0 0.0
  %1592 = vmatprep.subr.mxu0 0.0
  %1593 = vmatpush1.msra.mxu0 0.0
  %1594 = vmatprep.subr.mxu0 0.0
  %1595 = vmatpush1.msra.mxu0 0.0
  %1596 = vmatprep.subr.mxu0 0.0
  %1597 = vmatpush1.msra.mxu0 0.0
  %1598 = vmatprep.subr.mxu0 0.0
  %1599 = vmatpush1.msra.mxu0 0.0
  %1600 = vmatprep.subr.mxu0 0.0
  %1601 = vmatpush1.msra.mxu0 0.0
  %1602 = vmatprep.subr.mxu0 0.0
  %1603 = vmatpush1.msra.mxu0 0.0
  %1604 = vmatprep.subr.mxu0 0.0
  %1605 = vmatpush1.msra.mxu0 0.0
  %1606 = vmatprep.subr.mxu0 0.0
  %1607 = vmatpush1.msra.mxu0 0.0
  %1608 = vmatprep.subr.mxu0 0.0
  %1609 = vmatpush1.msra.mxu0 0.0
  %1610 = vmatprep.subr.mxu0 0.0
  %1611 = vmatpush1.msra.mxu0 0.0
  %1612 = vmatprep.mubr.f32.mxu0 0.0
  %1613 = vmatmul.mubr.f32.gmra.mrb[0].mxu0 %v53
  %v1614 = vpop.f32.mrb[0].mxu0
  %v1615 = vadd.f32 0.0, %v1614
  %v1616 = vpop.f32.mrb[0].mxu0
  %1617 = vmatprep.mubr.f32.mxu0 0.0
  %1618 = vmatmul.mubr.f32.gmra.mrb[0].mxu0 %v54
  %v1619 = vpop.f32.mrb[0].mxu0
  %v1620 = vadd.f32 0.0, %v1619
  %v1621 = vpop.f32.mrb[0].mxu0
  %1622 = vmatprep.mubr.f32.mxu0 0.0
  %1623 = vmatmul.mubr.f32.gmra.mrb[0].mxu0 %v55
  %v1624 = vpop.f32.mrb[0].mxu0
  %v1625 = vadd.f32 0.0, %v1624
  %v1626 = vpop.f32.mrb[0].mxu0
  %1627 = vmatprep.mubr.f32.mxu0 0.0
  %1628 = vmatmul.mubr.f32.gmra.mrb[0].mxu0 %v56
  %v1629 = vpop.f32.mrb[0].mxu0
  %v1630 = vadd.f32 0.0, %v1629
  %v1631 = vpop.f32.mrb[0].mxu0
  %1632 = vmatprep.mubr.f32.mxu0 0.0
  %1633 = vmatmul.mubr.f32.gmra.mrb[0].mxu0 %v57
  %v1634 = vpop.f32.mrb[0].mxu0
  %v1635 = vadd.f32 0.0, %v1634
  %v1636 = vpop.f32.mrb[0].mxu0
  %1637 = vmatprep.mubr.f32.mxu0 0.0
  %1638 = vmatmul.mubr.f32.gmra.mrb[0].mxu0 %v58
  %v1639 = vpop.f32.mrb[0].mxu0
  %v1640 = vadd.f32 0.0, %v1639
  %v1641 = vpop.f32.mrb[0].mxu0
  %1642 = vmatprep.mubr.f32.mxu0 0.0
  %1643 = vmatmul.mubr.f32.gmra.mrb[0].mxu0 %v59
  %v1644 = vpop.f32.mrb[0].mxu0
  %v1645 = vadd.f32 0.0, %v1644
  %v1646 = vpop.f32.mrb[0].mxu0
  %1647 = vmatprep.mubr.f32.mxu0 0.0
  %1648 = vmatmul.mubr.f32.gmra.mrb[0].mxu0 %v60
  %v1649 = vpop.f32.mrb[0].mxu0
  %v1650 = vadd.f32 0.0, %v1649
  %v1651 = vpop.f32.mrb[0].mxu0
  %1652 = vmatprep.mubr.f32.mxu0 0.0
  %1653 = vmatmul.mubr.f32.gmra.mrb[0].mxu0 %v61
  %v1654 = vpop.f32.mrb[0].mxu0
  %v1655 = vadd.f32 0.0, %v1654
  %v1656 = vpop.f32.mrb[0].mxu0
  %1657 = vmatprep.mubr.f32.mxu0 0.0
  %1658 = vmatmul.mubr.f32.gmra.mrb[0].mxu0 %v62
  %v1659 = vpop.f32.mrb[0].mxu0
  %v1660 = vadd.f32 0.0, %v1659
  %v1661 = vpop.f32.mrb[0].mxu0
  %1662 = vmatprep.mubr.f32.mxu0 0.0
  %1663 = vmatmul.mubr.f32.gmra.mrb[0].mxu0 %v63
  %v1664 = vpop.f32.mrb[0].mxu0
  %v1665 = vadd.f32 0.0, %v1664
  %v1666 = vpop.f32.mrb[0].mxu0
  %1667 = vmatprep.mubr.f32.mxu0 0.0
  %1668 = vmatmul.mubr.f32.gmra.mrb[0].mxu0 %v64
  %v1669 = vpop.f32.mrb[0].mxu0
  %v1670 = vadd.f32 0.0, %v1669
  %v1671 = vpop.f32.mrb[0].mxu0
  %1672 = vmatprep.mubr.f32.mxu0 0.0
  %1673 = vmatmul.mubr.f32.gmra.mrb[0].mxu0 %v65
  %v1674 = vpop.f32.mrb[0].mxu0
  %v1675 = vadd.f32 0.0, %v1674
  %v1676 = vpop.f32.mrb[0].mxu0
  %1677 = vmatprep.mubr.f32.mxu0 0.0
  %1678 = vmatmul.mubr.f32.gmra.mrb[0].mxu0 %v66
  %v1679 = vpop.f32.mrb[0].mxu0
  %v1680 = vadd.f32 0.0, %v1679
  %v1681 = vpop.f32.mrb[0].mxu0
  %1682 = vmatprep.mubr.f32.mxu0 0.0
  %1683 = vmatmul.mubr.f32.gmra.mrb[0].mxu0 %v67
  %v1684 = vpop.f32.mrb[0].mxu0
  %v1685 = vadd.f32 0.0, %v1684
  %v1686 = vpop.f32.mrb[0].mxu0
  %1687 = vmatprep.mubr.f32.mxu0 0.0
  %1688 = vmatmul.mubr.f32.gmra.mrb[0].mxu0 %v68
  %v1689 = vpop.f32.mrb[0].mxu0
  %v1690 = vadd.f32 0.0, %v1689
  %v1691 = vpop.f32.mrb[0].mxu0
  %1692 = vdwg.mxu0
  %v1693 = vmul.f32 %v1615, %v172
  %v1694 = vmul.f32 %v1620, %v173
  %v1695 = vmul.f32 %v1625, %v174
  %v1696 = vmul.f32 %v1630, %v175
  %v1697 = vmul.f32 %v1635, %v176
  %v1698 = vmul.f32 %v1640, %v177
  %v1699 = vmul.f32 %v1645, %v178
  %v1700 = vmul.f32 %v1650, %v179
  %v1701 = vmul.f32 %v1655, %v180
  %v1702 = vmul.f32 %v1660, %v181
  %v1703 = vmul.f32 %v1665, %v182
  %v1704 = vmul.f32 %v1670, %v183
  %v1705 = vmul.f32 %v1675, %v184
  %v1706 = vmul.f32 %v1680, %v185
  %v1707 = vmul.f32 %v1685, %v186
  %v1708 = vmul.f32 %v1690, %v187
  %v1710 = vsel %vm1098, %v1507, 0
  %v1713 = vsel %vm1098, %v1508, 0
  %v1716 = vsel %vm1098, %v1509, 0
  %v1719 = vsel %vm1098, %v1510, 0
  %v1722 = vsel %vm1098, %v1511, 0
  %v1725 = vsel %vm1098, %v1512, 0
  %v1728 = vsel %vm1098, %v1513, 0
  %v1731 = vsel %vm1098, %v1514, 0
  %v1734 = vsel %vm1098, %v1515, 0
  %v1737 = vsel %vm1098, %v1516, 0
  %v1740 = vsel %vm1098, %v1517, 0
  %v1743 = vsel %vm1098, %v1518, 0
  %v1746 = vsel %vm1098, %v1519, 0
  %v1749 = vsel %vm1098, %v1520, 0
  %v1752 = vsel %vm1098, %v1521, 0
  %v1755 = vsel %vm1098, %v1522, 0
  %1757 = vmatprep.subr.mxu0 0.0
  %1758 = vmatpush1.msra.mxu0 %v1527
  %1759 = vmatprep.subr.mxu0 0.0
  %1760 = vmatpush1.msra.mxu0 %v1528
  %1761 = vmatprep.subr.mxu0 0.0
  %1762 = vmatpush1.msra.mxu0 %v1529
  %1763 = vmatprep.subr.mxu0 0.0
  %1764 = vmatpush1.msra.mxu0 %v1530
  %1765 = vmatprep.subr.mxu0 0.0
  %1766 = vmatpush1.msra.mxu0 0.0
  %1767 = vmatprep.subr.mxu0 0.0
  %1768 = vmatpush1.msra.mxu0 0.0
  %1769 = vmatprep.subr.mxu0 0.0
  %1770 = vmatpush1.msra.mxu0 0.0
  %1771 = vmatprep.subr.mxu0 0.0
  %1772 = vmatpush1.msra.mxu0 0.0
  %1773 = vmatprep.subr.mxu0 0.0
  %1774 = vmatpush1.msra.mxu0 0.0
  %1775 = vmatprep.subr.mxu0 0.0
  %1776 = vmatpush1.msra.mxu0 0.0
  %1777 = vmatprep.subr.mxu0 0.0
  %1778 = vmatpush1.msra.mxu0 0.0
  %1779 = vmatprep.subr.mxu0 0.0
  %1780 = vmatpush1.msra.mxu0 0.0
  %1781 = vmatprep.subr.mxu0 0.0
  %1782 = vmatpush1.msra.mxu0 0.0
  %1783 = vmatprep.subr.mxu0 0.0
  %1784 = vmatpush1.msra.mxu0 0.0
  %1785 = vmatprep.subr.mxu0 0.0
  %1786 = vmatpush1.msra.mxu0 0.0
  %1787 = vmatprep.subr.mxu0 0.0
  %1788 = vmatpush1.msra.mxu0 0.0
  %1789 = vmatprep.subr.mxu0 0.0
  %1790 = vmatpush1.msra.mxu0 0.0
  %1791 = vmatprep.subr.mxu0 0.0
  %1792 = vmatpush1.msra.mxu0 0.0
  %1793 = vmatprep.subr.mxu0 0.0
  %1794 = vmatpush1.msra.mxu0 0.0
  %1795 = vmatprep.subr.mxu0 0.0
  %1796 = vmatpush1.msra.mxu0 0.0
  %1797 = vmatprep.subr.mxu0 0.0
  %1798 = vmatpush1.msra.mxu0 0.0
  %1799 = vmatprep.subr.mxu0 0.0
  %1800 = vmatpush1.msra.mxu0 0.0
  %1801 = vmatprep.subr.mxu0 0.0
  %1802 = vmatpush1.msra.mxu0 0.0
  %1803 = vmatprep.subr.mxu0 0.0
  %1804 = vmatpush1.msra.mxu0 0.0
  %1805 = vmatprep.subr.mxu0 0.0
  %1806 = vmatpush1.msra.mxu0 0.0
  %1807 = vmatprep.subr.mxu0 0.0
  %1808 = vmatpush1.msra.mxu0 0.0
  %1809 = vmatprep.subr.mxu0 0.0
  %1810 = vmatpush1.msra.mxu0 0.0
  %1811 = vmatprep.subr.mxu0 0.0
  %1812 = vmatpush1.msra.mxu0 0.0
  %1813 = vmatprep.subr.mxu0 0.0
  %1814 = vmatpush1.msra.mxu0 0.0
  %1815 = vmatprep.subr.mxu0 0.0
  %1816 = vmatpush1.msra.mxu0 0.0
  %1817 = vmatprep.subr.mxu0 0.0
  %1818 = vmatpush1.msra.mxu0 0.0
  %1819 = vmatprep.subr.mxu0 0.0
  %1820 = vmatpush1.msra.mxu0 0.0
  %1821 = vmatprep.mubr.f32.mxu0 0.0
  %1822 = vmatmul.mubr.f32.gmra.mrb[0].mxu0 %v1710
  %v1823 = vpop.f32.mrb[0].mxu0
  %v1824 = vadd.f32 0.0, %v1823
  %v1825 = vpop.f32.mrb[0].mxu0
  %1826 = vmatprep.mubr.f32.mxu0 0.0
  %1827 = vmatmul.mubr.f32.gmra.mrb[0].mxu0 %v1713
  %v1828 = vpop.f32.mrb[0].mxu0
  %v1829 = vadd.f32 0.0, %v1828
  %v1830 = vpop.f32.mrb[0].mxu0
  %1831 = vmatprep.mubr.f32.mxu0 0.0
  %1832 = vmatmul.mubr.f32.gmra.mrb[0].mxu0 %v1716
  %v1833 = vpop.f32.mrb[0].mxu0
  %v1834 = vadd.f32 0.0, %v1833
  %v1835 = vpop.f32.mrb[0].mxu0
  %1836 = vmatprep.mubr.f32.mxu0 0.0
  %1837 = vmatmul.mubr.f32.gmra.mrb[0].mxu0 %v1719
  %v1838 = vpop.f32.mrb[0].mxu0
  %v1839 = vadd.f32 0.0, %v1838
  %v1840 = vpop.f32.mrb[0].mxu0
  %1841 = vmatprep.mubr.f32.mxu0 0.0
  %1842 = vmatmul.mubr.f32.gmra.mrb[0].mxu0 %v1722
  %v1843 = vpop.f32.mrb[0].mxu0
  %v1844 = vadd.f32 0.0, %v1843
  %v1845 = vpop.f32.mrb[0].mxu0
  %1846 = vmatprep.mubr.f32.mxu0 0.0
  %1847 = vmatmul.mubr.f32.gmra.mrb[0].mxu0 %v1725
  %v1848 = vpop.f32.mrb[0].mxu0
  %v1849 = vadd.f32 0.0, %v1848
  %v1850 = vpop.f32.mrb[0].mxu0
  %1851 = vmatprep.mubr.f32.mxu0 0.0
  %1852 = vmatmul.mubr.f32.gmra.mrb[0].mxu0 %v1728
  %v1853 = vpop.f32.mrb[0].mxu0
  %v1854 = vadd.f32 0.0, %v1853
  %v1855 = vpop.f32.mrb[0].mxu0
  %1856 = vmatprep.mubr.f32.mxu0 0.0
  %1857 = vmatmul.mubr.f32.gmra.mrb[0].mxu0 %v1731
  %v1858 = vpop.f32.mrb[0].mxu0
  %v1859 = vadd.f32 0.0, %v1858
  %v1860 = vpop.f32.mrb[0].mxu0
  %1861 = vmatprep.mubr.f32.mxu0 0.0
  %1862 = vmatmul.mubr.f32.gmra.mrb[0].mxu0 %v1734
  %v1863 = vpop.f32.mrb[0].mxu0
  %v1864 = vadd.f32 0.0, %v1863
  %v1865 = vpop.f32.mrb[0].mxu0
  %1866 = vmatprep.mubr.f32.mxu0 0.0
  %1867 = vmatmul.mubr.f32.gmra.mrb[0].mxu0 %v1737
  %v1868 = vpop.f32.mrb[0].mxu0
  %v1869 = vadd.f32 0.0, %v1868
  %v1870 = vpop.f32.mrb[0].mxu0
  %1871 = vmatprep.mubr.f32.mxu0 0.0
  %1872 = vmatmul.mubr.f32.gmra.mrb[0].mxu0 %v1740
  %v1873 = vpop.f32.mrb[0].mxu0
  %v1874 = vadd.f32 0.0, %v1873
  %v1875 = vpop.f32.mrb[0].mxu0
  %1876 = vmatprep.mubr.f32.mxu0 0.0
  %1877 = vmatmul.mubr.f32.gmra.mrb[0].mxu0 %v1743
  %v1878 = vpop.f32.mrb[0].mxu0
  %v1879 = vadd.f32 0.0, %v1878
  %v1880 = vpop.f32.mrb[0].mxu0
  %1881 = vmatprep.mubr.f32.mxu0 0.0
  %1882 = vmatmul.mubr.f32.gmra.mrb[0].mxu0 %v1746
  %v1883 = vpop.f32.mrb[0].mxu0
  %v1884 = vadd.f32 0.0, %v1883
  %v1885 = vpop.f32.mrb[0].mxu0
  %1886 = vmatprep.mubr.f32.mxu0 0.0
  %1887 = vmatmul.mubr.f32.gmra.mrb[0].mxu0 %v1749
  %v1888 = vpop.f32.mrb[0].mxu0
  %v1889 = vadd.f32 0.0, %v1888
  %v1890 = vpop.f32.mrb[0].mxu0
  %1891 = vmatprep.mubr.f32.mxu0 0.0
  %1892 = vmatmul.mubr.f32.gmra.mrb[0].mxu0 %v1752
  %v1893 = vpop.f32.mrb[0].mxu0
  %v1894 = vadd.f32 0.0, %v1893
  %v1895 = vpop.f32.mrb[0].mxu0
  %1896 = vmatprep.mubr.f32.mxu0 0.0
  %1897 = vmatmul.mubr.f32.gmra.mrb[0].mxu0 %v1755
  %v1898 = vpop.f32.mrb[0].mxu0
  %v1899 = vadd.f32 0.0, %v1898
  %v1900 = vpop.f32.mrb[0].mxu0
  %1901 = vdwg.mxu0
  %v1903 = vsel %vm1098, %v1693, 0
  %v1906 = vsel %vm1098, %v1694, 0
  %v1909 = vsel %vm1098, %v1695, 0
  %v1912 = vsel %vm1098, %v1696, 0
  %v1915 = vsel %vm1098, %v1697, 0
  %v1918 = vsel %vm1098, %v1698, 0
  %v1921 = vsel %vm1098, %v1699, 0
  %v1924 = vsel %vm1098, %v1700, 0
  %v1927 = vsel %vm1098, %v1701, 0
  %v1930 = vsel %vm1098, %v1702, 0
  %v1933 = vsel %vm1098, %v1703, 0
  %v1936 = vsel %vm1098, %v1704, 0
  %v1939 = vsel %vm1098, %v1705, 0
  %v1942 = vsel %vm1098, %v1706, 0
  %v1945 = vsel %vm1098, %v1707, 0
  %v1948 = vsel %vm1098, %v1708, 0
  %1950 = vmatprep.subr.mxu0 0.0
  %1951 = vmatpush1.msra.mxu0 %v1523
  %1952 = vmatprep.subr.mxu0 0.0
  %1953 = vmatpush1.msra.mxu0 %v1524
  %1954 = vmatprep.subr.mxu0 0.0
  %1955 = vmatpush1.msra.mxu0 %v1525
  %1956 = vmatprep.subr.mxu0 0.0
  %1957 = vmatpush1.msra.mxu0 %v1526
  %1958 = vmatprep.subr.mxu0 0.0
  %1959 = vmatpush1.msra.mxu0 0.0
  %1960 = vmatprep.subr.mxu0 0.0
  %1961 = vmatpush1.msra.mxu0 0.0
  %1962 = vmatprep.subr.mxu0 0.0
  %1963 = vmatpush1.msra.mxu0 0.0
  %1964 = vmatprep.subr.mxu0 0.0
  %1965 = vmatpush1.msra.mxu0 0.0
  %1966 = vmatprep.subr.mxu0 0.0
  %1967 = vmatpush1.msra.mxu0 0.0
  %1968 = vmatprep.subr.mxu0 0.0
  %1969 = vmatpush1.msra.mxu0 0.0
  %1970 = vmatprep.subr.mxu0 0.0
  %1971 = vmatpush1.msra.mxu0 0.0
  %1972 = vmatprep.subr.mxu0 0.0
  %1973 = vmatpush1.msra.mxu0 0.0
  %1974 = vmatprep.subr.mxu0 0.0
  %1975 = vmatpush1.msra.mxu0 0.0
  %1976 = vmatprep.subr.mxu0 0.0
  %1977 = vmatpush1.msra.mxu0 0.0
  %1978 = vmatprep.subr.mxu0 0.0
  %1979 = vmatpush1.msra.mxu0 0.0
  %1980 = vmatprep.subr.mxu0 0.0
  %1981 = vmatpush1.msra.mxu0 0.0
  %1982 = vmatprep.subr.mxu0 0.0
  %1983 = vmatpush1.msra.mxu0 0.0
  %1984 = vmatprep.subr.mxu0 0.0
  %1985 = vmatpush1.msra.mxu0 0.0
  %1986 = vmatprep.subr.mxu0 0.0
  %1987 = vmatpush1.msra.mxu0 0.0
  %1988 = vmatprep.subr.mxu0 0.0
  %1989 = vmatpush1.msra.mxu0 0.0
  %1990 = vmatprep.subr.mxu0 0.0
  %1991 = vmatpush1.msra.mxu0 0.0
  %1992 = vmatprep.subr.mxu0 0.0
  %1993 = vmatpush1.msra.mxu0 0.0
  %1994 = vmatprep.subr.mxu0 0.0
  %1995 = vmatpush1.msra.mxu0 0.0
  %1996 = vmatprep.subr.mxu0 0.0
  %1997 = vmatpush1.msra.mxu0 0.0
  %1998 = vmatprep.subr.mxu0 0.0
  %1999 = vmatpush1.msra.mxu0 0.0
  %2000 = vmatprep.subr.mxu0 0.0
  %2001 = vmatpush1.msra.mxu0 0.0
  %2002 = vmatprep.subr.mxu0 0.0
  %2003 = vmatpush1.msra.mxu0 0.0
  %2004 = vmatprep.subr.mxu0 0.0
  %2005 = vmatpush1.msra.mxu0 0.0
  %2006 = vmatprep.subr.mxu0 0.0
  %2007 = vmatpush1.msra.mxu0 0.0
  %2008 = vmatprep.subr.mxu0 0.0
  %2009 = vmatpush1.msra.mxu0 0.0
  %2010 = vmatprep.subr.mxu0 0.0
  %2011 = vmatpush1.msra.mxu0 0.0
  %2012 = vmatprep.subr.mxu0 0.0
  %2013 = vmatpush1.msra.mxu0 0.0
  %2014 = vmatprep.mubr.f32.mxu0 0.0
  %2015 = vmatmul.mubr.f32.gmra.mrb[0].mxu0 %v1903
  %v2016 = vpop.f32.mrb[0].mxu0
  %v2017 = vadd.f32 %v1824, %v2016
  %v2018 = vpop.f32.mrb[0].mxu0
  %2019 = vmatprep.mubr.f32.mxu0 0.0
  %2020 = vmatmul.mubr.f32.gmra.mrb[0].mxu0 %v1906
  %v2021 = vpop.f32.mrb[0].mxu0
  %v2022 = vadd.f32 %v1829, %v2021
  %v2023 = vpop.f32.mrb[0].mxu0
  %2024 = vmatprep.mubr.f32.mxu0 0.0
  %2025 = vmatmul.mubr.f32.gmra.mrb[0].mxu0 %v1909
  %v2026 = vpop.f32.mrb[0].mxu0
  %v2027 = vadd.f32 %v1834, %v2026
  %v2028 = vpop.f32.mrb[0].mxu0
  %2029 = vmatprep.mubr.f32.mxu0 0.0
  %2030 = vmatmul.mubr.f32.gmra.mrb[0].mxu0 %v1912
  %v2031 = vpop.f32.mrb[0].mxu0
  %v2032 = vadd.f32 %v1839, %v2031
  %v2033 = vpop.f32.mrb[0].mxu0
  %2034 = vmatprep.mubr.f32.mxu0 0.0
  %2035 = vmatmul.mubr.f32.gmra.mrb[0].mxu0 %v1915
  %v2036 = vpop.f32.mrb[0].mxu0
  %v2037 = vadd.f32 %v1844, %v2036
  %v2038 = vpop.f32.mrb[0].mxu0
  %2039 = vmatprep.mubr.f32.mxu0 0.0
  %2040 = vmatmul.mubr.f32.gmra.mrb[0].mxu0 %v1918
  %v2041 = vpop.f32.mrb[0].mxu0
  %v2042 = vadd.f32 %v1849, %v2041
  %v2043 = vpop.f32.mrb[0].mxu0
  %2044 = vmatprep.mubr.f32.mxu0 0.0
  %2045 = vmatmul.mubr.f32.gmra.mrb[0].mxu0 %v1921
  %v2046 = vpop.f32.mrb[0].mxu0
  %v2047 = vadd.f32 %v1854, %v2046
  %v2048 = vpop.f32.mrb[0].mxu0
  %2049 = vmatprep.mubr.f32.mxu0 0.0
  %2050 = vmatmul.mubr.f32.gmra.mrb[0].mxu0 %v1924
  %v2051 = vpop.f32.mrb[0].mxu0
  %v2052 = vadd.f32 %v1859, %v2051
  %v2053 = vpop.f32.mrb[0].mxu0
  %2054 = vmatprep.mubr.f32.mxu0 0.0
  %2055 = vmatmul.mubr.f32.gmra.mrb[0].mxu0 %v1927
  %v2056 = vpop.f32.mrb[0].mxu0
  %v2057 = vadd.f32 %v1864, %v2056
  %v2058 = vpop.f32.mrb[0].mxu0
  %2059 = vmatprep.mubr.f32.mxu0 0.0
  %2060 = vmatmul.mubr.f32.gmra.mrb[0].mxu0 %v1930
  %v2061 = vpop.f32.mrb[0].mxu0
  %v2062 = vadd.f32 %v1869, %v2061
  %v2063 = vpop.f32.mrb[0].mxu0
  %2064 = vmatprep.mubr.f32.mxu0 0.0
  %2065 = vmatmul.mubr.f32.gmra.mrb[0].mxu0 %v1933
  %v2066 = vpop.f32.mrb[0].mxu0
  %v2067 = vadd.f32 %v1874, %v2066
  %v2068 = vpop.f32.mrb[0].mxu0
  %2069 = vmatprep.mubr.f32.mxu0 0.0
  %2070 = vmatmul.mubr.f32.gmra.mrb[0].mxu0 %v1936
  %v2071 = vpop.f32.mrb[0].mxu0
  %v2072 = vadd.f32 %v1879, %v2071
  %v2073 = vpop.f32.mrb[0].mxu0
  %2074 = vmatprep.mubr.f32.mxu0 0.0
  %2075 = vmatmul.mubr.f32.gmra.mrb[0].mxu0 %v1939
  %v2076 = vpop.f32.mrb[0].mxu0
  %v2077 = vadd.f32 %v1884, %v2076
  %v2078 = vpop.f32.mrb[0].mxu0
  %2079 = vmatprep.mubr.f32.mxu0 0.0
  %2080 = vmatmul.mubr.f32.gmra.mrb[0].mxu0 %v1942
  %v2081 = vpop.f32.mrb[0].mxu0
  %v2082 = vadd.f32 %v1889, %v2081
  %v2083 = vpop.f32.mrb[0].mxu0
  %2084 = vmatprep.mubr.f32.mxu0 0.0
  %2085 = vmatmul.mubr.f32.gmra.mrb[0].mxu0 %v1945
  %v2086 = vpop.f32.mrb[0].mxu0
  %v2087 = vadd.f32 %v1894, %v2086
  %v2088 = vpop.f32.mrb[0].mxu0
  %2089 = vmatprep.mubr.f32.mxu0 0.0
  %2090 = vmatmul.mubr.f32.gmra.mrb[0].mxu0 %v1948
  %v2091 = vpop.f32.mrb[0].mxu0
  %v2092 = vadd.f32 %v1899, %v2091
  %v2093 = vpop.f32.mrb[0].mxu0
  %2094 = vdwg.mxu0
  %v2096 = vlaneseq
  %v2097 = vshrl.u32 %v2096, 7
  %v2098 = vsub.s32 0, %v2097
  %v2099 = vrot.slane %v1531, %v2098
  %v2101 = vadd.f32 %v2017, %v2099
  %v2102 = vadd.f32 %v2022, %v2099
  %v2103 = vadd.f32 %v2027, %v2099
  %v2104 = vadd.f32 %v2032, %v2099
  %v2105 = vadd.f32 %v2037, %v2099
  %v2106 = vadd.f32 %v2042, %v2099
  %v2107 = vadd.f32 %v2047, %v2099
  %v2108 = vadd.f32 %v2052, %v2099
  %v2109 = vadd.f32 %v2057, %v2099
  %v2110 = vadd.f32 %v2062, %v2099
  %v2111 = vadd.f32 %v2067, %v2099
  %v2112 = vadd.f32 %v2072, %v2099
  %v2113 = vadd.f32 %v2077, %v2099
  %v2114 = vadd.f32 %v2082, %v2099
  %v2115 = vadd.f32 %v2087, %v2099
  %v2116 = vadd.f32 %v2092, %v2099
  %v2117 = vmax.f32 %v2101, 0.0
  %v2118 = vmax.f32 %v2102, 0.0
  %v2119 = vmax.f32 %v2103, 0.0
  %v2120 = vmax.f32 %v2104, 0.0
  %v2121 = vmax.f32 %v2105, 0.0
  %v2122 = vmax.f32 %v2106, 0.0
  %v2123 = vmax.f32 %v2107, 0.0
  %v2124 = vmax.f32 %v2108, 0.0
  %v2125 = vmax.f32 %v2109, 0.0
  %v2126 = vmax.f32 %v2110, 0.0
  %v2127 = vmax.f32 %v2111, 0.0
  %v2128 = vmax.f32 %v2112, 0.0
  %v2129 = vmax.f32 %v2113, 0.0
  %v2130 = vmax.f32 %v2114, 0.0
  %v2131 = vmax.f32 %v2115, 0.0
  %v2132 = vmax.f32 %v2116, 0.0
  %v2133 = vld [vmem:[%s13] sm:$0xff]
  %v2134 = vld [vmem:[%s13 + $0x8] sm:$0xff]
  %v2135 = vld [vmem:[%s13 + $0x10] sm:$0xff]
  %v2136 = vld [vmem:[%s13 + $0x18] sm:$0xff]
  %v2137 = vld [vmem:[%s14] sm:$0xff]
  %v2138 = vld [vmem:[%s14 + $0x8] sm:$0xff]
  %v2139 = vld [vmem:[%s14 + $0x10] sm:$0xff]
  %v2140 = vld [vmem:[%s14 + $0x18] sm:$0xff]
  %v2141 = vld [vmem:[%s15] sm:$0x1]
  %v2142 = vmul.f32 %v2117, %v226
  %v2143 = vmul.f32 %v2118, %v231
  %v2144 = vmul.f32 %v2119, %v236
  %v2145 = vmul.f32 %v2120, %v241
  %v2146 = vmul.f32 %v2121, %v246
  %v2147 = vmul.f32 %v2122, %v251
  %v2148 = vmul.f32 %v2123, %v256
  %v2149 = vmul.f32 %v2124, %v261
  %v2150 = vmul.f32 %v2125, %v266
  %v2151 = vmul.f32 %v2126, %v271
  %v2152 = vmul.f32 %v2127, %v276
  %v2153 = vmul.f32 %v2128, %v281
  %v2154 = vmul.f32 %v2129, %v286
  %v2155 = vmul.f32 %v2130, %v291
  %v2156 = vmul.f32 %v2131, %v296
  %v2157 = vmul.f32 %v2132, %v301
  %2158 = vmatprep.subr.mxu0 0.0
  %2159 = vmatpush1.msra.mxu0 %v2142
  %2160 = vmatprep.subr.mxu0 0.0
  %2161 = vmatpush1.msra.mxu0 %v2143
  %2162 = vmatprep.subr.mxu0 0.0
  %2163 = vmatpush1.msra.mxu0 %v2144
  %2164 = vmatprep.subr.mxu0 0.0
  %2165 = vmatpush1.msra.mxu0 %v2145
  %2166 = vmatprep.subr.mxu0 0.0
  %2167 = vmatpush1.msra.mxu0 %v2146
  %2168 = vmatprep.subr.mxu0 0.0
  %2169 = vmatpush1.msra.mxu0 %v2147
  %2170 = vmatprep.subr.mxu0 0.0
  %2171 = vmatpush1.msra.mxu0 %v2148
  %2172 = vmatprep.subr.mxu0 0.0
  %2173 = vmatpush1.msra.mxu0 %v2149
  %2174 = vmatprep.subr.mxu0 0.0
  %2175 = vmatpush1.msra.mxu0 %v2150
  %2176 = vmatprep.subr.mxu0 0.0
  %2177 = vmatpush1.msra.mxu0 %v2151
  %2178 = vmatprep.subr.mxu0 0.0
  %2179 = vmatpush1.msra.mxu0 %v2152
  %2180 = vmatprep.subr.mxu0 0.0
  %2181 = vmatpush1.msra.mxu0 %v2153
  %2182 = vmatprep.subr.mxu0 0.0
  %2183 = vmatpush1.msra.mxu0 %v2154
  %2184 = vmatprep.subr.mxu0 0.0
  %2185 = vmatpush1.msra.mxu0 %v2155
  %2186 = vmatprep.subr.mxu0 0.0
  %2187 = vmatpush1.msra.mxu0 %v2156
  %2188 = vmatprep.subr.mxu0 0.0
  %2189 = vmatpush1.msra.mxu0 %v2157
  %2190 = vmatprep.subr.mxu0 0.0
  %2191 = vmatpush1.msra.mxu0 0.0
  %2192 = vmatprep.subr.mxu0 0.0
  %2193 = vmatpush1.msra.mxu0 0.0
  %2194 = vmatprep.subr.mxu0 0.0
  %2195 = vmatpush1.msra.mxu0 0.0
  %2196 = vmatprep.subr.mxu0 0.0
  %2197 = vmatpush1.msra.mxu0 0.0
  %2198 = vmatprep.subr.mxu0 0.0
  %2199 = vmatpush1.msra.mxu0 0.0
  %2200 = vmatprep.subr.mxu0 0.0
  %2201 = vmatpush1.msra.mxu0 0.0
  %2202 = vmatprep.subr.mxu0 0.0
  %2203 = vmatpush1.msra.mxu0 0.0
  %2204 = vmatprep.subr.mxu0 0.0
  %2205 = vmatpush1.msra.mxu0 0.0
  %2206 = vmatprep.subr.mxu0 0.0
  %2207 = vmatpush1.msra.mxu0 0.0
  %2208 = vmatprep.subr.mxu0 0.0
  %2209 = vmatpush1.msra.mxu0 0.0
  %2210 = vmatprep.subr.mxu0 0.0
  %2211 = vmatpush1.msra.mxu0 0.0
  %2212 = vmatprep.subr.mxu0 0.0
  %2213 = vmatpush1.msra.mxu0 0.0
  %2214 = vmatprep.subr.mxu0 0.0
  %2215 = vmatpush1.msra.mxu0 0.0
  %2216 = vmatprep.subr.mxu0 0.0
  %2217 = vmatpush1.msra.mxu0 0.0
  %2218 = vmatprep.subr.mxu0 0.0
  %2219 = vmatpush1.msra.mxu0 0.0
  %2220 = vmatprep.subr.mxu0 0.0
  %2221 = vmatpush1.msra.mxu0 0.0
  %2222 = vmatprep.mubr.f32.mxu0 0.0
  %2223 = vmatmul.mubr.f32.gmra.mrb[0].mxu0 %v53
  %v2224 = vpop.f32.mrb[0].mxu0
  %v2225 = vadd.f32 0.0, %v2224
  %v2226 = vpop.f32.mrb[0].mxu0
  %2227 = vmatprep.mubr.f32.mxu0 0.0
  %2228 = vmatmul.mubr.f32.gmra.mrb[0].mxu0 %v54
  %v2229 = vpop.f32.mrb[0].mxu0
  %v2230 = vadd.f32 0.0, %v2229
  %v2231 = vpop.f32.mrb[0].mxu0
  %2232 = vmatprep.mubr.f32.mxu0 0.0
  %2233 = vmatmul.mubr.f32.gmra.mrb[0].mxu0 %v55
  %v2234 = vpop.f32.mrb[0].mxu0
  %v2235 = vadd.f32 0.0, %v2234
  %v2236 = vpop.f32.mrb[0].mxu0
  %2237 = vmatprep.mubr.f32.mxu0 0.0
  %2238 = vmatmul.mubr.f32.gmra.mrb[0].mxu0 %v56
  %v2239 = vpop.f32.mrb[0].mxu0
  %v2240 = vadd.f32 0.0, %v2239
  %v2241 = vpop.f32.mrb[0].mxu0
  %2242 = vmatprep.mubr.f32.mxu0 0.0
  %2243 = vmatmul.mubr.f32.gmra.mrb[0].mxu0 %v57
  %v2244 = vpop.f32.mrb[0].mxu0
  %v2245 = vadd.f32 0.0, %v2244
  %v2246 = vpop.f32.mrb[0].mxu0
  %2247 = vmatprep.mubr.f32.mxu0 0.0
  %2248 = vmatmul.mubr.f32.gmra.mrb[0].mxu0 %v58
  %v2249 = vpop.f32.mrb[0].mxu0
  %v2250 = vadd.f32 0.0, %v2249
  %v2251 = vpop.f32.mrb[0].mxu0
  %2252 = vmatprep.mubr.f32.mxu0 0.0
  %2253 = vmatmul.mubr.f32.gmra.mrb[0].mxu0 %v59
  %v2254 = vpop.f32.mrb[0].mxu0
  %v2255 = vadd.f32 0.0, %v2254
  %v2256 = vpop.f32.mrb[0].mxu0
  %2257 = vmatprep.mubr.f32.mxu0 0.0
  %2258 = vmatmul.mubr.f32.gmra.mrb[0].mxu0 %v60
  %v2259 = vpop.f32.mrb[0].mxu0
  %v2260 = vadd.f32 0.0, %v2259
  %v2261 = vpop.f32.mrb[0].mxu0
  %2262 = vmatprep.mubr.f32.mxu0 0.0
  %2263 = vmatmul.mubr.f32.gmra.mrb[0].mxu0 %v61
  %v2264 = vpop.f32.mrb[0].mxu0
  %v2265 = vadd.f32 0.0, %v2264
  %v2266 = vpop.f32.mrb[0].mxu0
  %2267 = vmatprep.mubr.f32.mxu0 0.0
  %2268 = vmatmul.mubr.f32.gmra.mrb[0].mxu0 %v62
  %v2269 = vpop.f32.mrb[0].mxu0
  %v2270 = vadd.f32 0.0, %v2269
  %v2271 = vpop.f32.mrb[0].mxu0
  %2272 = vmatprep.mubr.f32.mxu0 0.0
  %2273 = vmatmul.mubr.f32.gmra.mrb[0].mxu0 %v63
  %v2274 = vpop.f32.mrb[0].mxu0
  %v2275 = vadd.f32 0.0, %v2274
  %v2276 = vpop.f32.mrb[0].mxu0
  %2277 = vmatprep.mubr.f32.mxu0 0.0
  %2278 = vmatmul.mubr.f32.gmra.mrb[0].mxu0 %v64
  %v2279 = vpop.f32.mrb[0].mxu0
  %v2280 = vadd.f32 0.0, %v2279
  %v2281 = vpop.f32.mrb[0].mxu0
  %2282 = vmatprep.mubr.f32.mxu0 0.0
  %2283 = vmatmul.mubr.f32.gmra.mrb[0].mxu0 %v65
  %v2284 = vpop.f32.mrb[0].mxu0
  %v2285 = vadd.f32 0.0, %v2284
  %v2286 = vpop.f32.mrb[0].mxu0
  %2287 = vmatprep.mubr.f32.mxu0 0.0
  %2288 = vmatmul.mubr.f32.gmra.mrb[0].mxu0 %v66
  %v2289 = vpop.f32.mrb[0].mxu0
  %v2290 = vadd.f32 0.0, %v2289
  %v2291 = vpop.f32.mrb[0].mxu0
  %2292 = vmatprep.mubr.f32.mxu0 0.0
  %2293 = vmatmul.mubr.f32.gmra.mrb[0].mxu0 %v67
  %v2294 = vpop.f32.mrb[0].mxu0
  %v2295 = vadd.f32 0.0, %v2294
  %v2296 = vpop.f32.mrb[0].mxu0
  %2297 = vmatprep.mubr.f32.mxu0 0.0
  %2298 = vmatmul.mubr.f32.gmra.mrb[0].mxu0 %v68
  %v2299 = vpop.f32.mrb[0].mxu0
  %v2300 = vadd.f32 0.0, %v2299
  %v2301 = vpop.f32.mrb[0].mxu0
  %2302 = vdwg.mxu0
  %v2303 = vmul.f32 %v2225, %v172
  %v2304 = vmul.f32 %v2230, %v173
  %v2305 = vmul.f32 %v2235, %v174
  %v2306 = vmul.f32 %v2240, %v175
  %v2307 = vmul.f32 %v2245, %v176
  %v2308 = vmul.f32 %v2250, %v177
  %v2309 = vmul.f32 %v2255, %v178
  %v2310 = vmul.f32 %v2260, %v179
  %v2311 = vmul.f32 %v2265, %v180
  %v2312 = vmul.f32 %v2270, %v181
  %v2313 = vmul.f32 %v2275, %v182
  %v2314 = vmul.f32 %v2280, %v183
  %v2315 = vmul.f32 %v2285, %v184
  %v2316 = vmul.f32 %v2290, %v185
  %v2317 = vmul.f32 %v2295, %v186
  %v2318 = vmul.f32 %v2300, %v187
  %v2320 = vsel %vm1098, %v2117, 0
  %v2323 = vsel %vm1098, %v2118, 0
  %v2326 = vsel %vm1098, %v2119, 0
  %v2329 = vsel %vm1098, %v2120, 0
  %v2332 = vsel %vm1098, %v2121, 0
  %v2335 = vsel %vm1098, %v2122, 0
  %v2338 = vsel %vm1098, %v2123, 0
  %v2341 = vsel %vm1098, %v2124, 0
  %v2344 = vsel %vm1098, %v2125, 0
  %v2347 = vsel %vm1098, %v2126, 0
  %v2350 = vsel %vm1098, %v2127, 0
  %v2353 = vsel %vm1098, %v2128, 0
  %v2356 = vsel %vm1098, %v2129, 0
  %v2359 = vsel %vm1098, %v2130, 0
  %v2362 = vsel %vm1098, %v2131, 0
  %v2365 = vsel %vm1098, %v2132, 0
  %2367 = vmatprep.subr.mxu0 0.0
  %2368 = vmatpush1.msra.mxu0 %v2137
  %2369 = vmatprep.subr.mxu0 0.0
  %2370 = vmatpush1.msra.mxu0 %v2138
  %2371 = vmatprep.subr.mxu0 0.0
  %2372 = vmatpush1.msra.mxu0 %v2139
  %2373 = vmatprep.subr.mxu0 0.0
  %2374 = vmatpush1.msra.mxu0 %v2140
  %2375 = vmatprep.subr.mxu0 0.0
  %2376 = vmatpush1.msra.mxu0 0.0
  %2377 = vmatprep.subr.mxu0 0.0
  %2378 = vmatpush1.msra.mxu0 0.0
  %2379 = vmatprep.subr.mxu0 0.0
  %2380 = vmatpush1.msra.mxu0 0.0
  %2381 = vmatprep.subr.mxu0 0.0
  %2382 = vmatpush1.msra.mxu0 0.0
  %2383 = vmatprep.subr.mxu0 0.0
  %2384 = vmatpush1.msra.mxu0 0.0
  %2385 = vmatprep.subr.mxu0 0.0
  %2386 = vmatpush1.msra.mxu0 0.0
  %2387 = vmatprep.subr.mxu0 0.0
  %2388 = vmatpush1.msra.mxu0 0.0
  %2389 = vmatprep.subr.mxu0 0.0
  %2390 = vmatpush1.msra.mxu0 0.0
  %2391 = vmatprep.subr.mxu0 0.0
  %2392 = vmatpush1.msra.mxu0 0.0
  %2393 = vmatprep.subr.mxu0 0.0
  %2394 = vmatpush1.msra.mxu0 0.0
  %2395 = vmatprep.subr.mxu0 0.0
  %2396 = vmatpush1.msra.mxu0 0.0
  %2397 = vmatprep.subr.mxu0 0.0
  %2398 = vmatpush1.msra.mxu0 0.0
  %2399 = vmatprep.subr.mxu0 0.0
  %2400 = vmatpush1.msra.mxu0 0.0
  %2401 = vmatprep.subr.mxu0 0.0
  %2402 = vmatpush1.msra.mxu0 0.0
  %2403 = vmatprep.subr.mxu0 0.0
  %2404 = vmatpush1.msra.mxu0 0.0
  %2405 = vmatprep.subr.mxu0 0.0
  %2406 = vmatpush1.msra.mxu0 0.0
  %2407 = vmatprep.subr.mxu0 0.0
  %2408 = vmatpush1.msra.mxu0 0.0
  %2409 = vmatprep.subr.mxu0 0.0
  %2410 = vmatpush1.msra.mxu0 0.0
  %2411 = vmatprep.subr.mxu0 0.0
  %2412 = vmatpush1.msra.mxu0 0.0
  %2413 = vmatprep.subr.mxu0 0.0
  %2414 = vmatpush1.msra.mxu0 0.0
  %2415 = vmatprep.subr.mxu0 0.0
  %2416 = vmatpush1.msra.mxu0 0.0
  %2417 = vmatprep.subr.mxu0 0.0
  %2418 = vmatpush1.msra.mxu0 0.0
  %2419 = vmatprep.subr.mxu0 0.0
  %2420 = vmatpush1.msra.mxu0 0.0
  %2421 = vmatprep.subr.mxu0 0.0
  %2422 = vmatpush1.msra.mxu0 0.0
  %2423 = vmatprep.subr.mxu0 0.0
  %2424 = vmatpush1.msra.mxu0 0.0
  %2425 = vmatprep.subr.mxu0 0.0
  %2426 = vmatpush1.msra.mxu0 0.0
  %2427 = vmatprep.subr.mxu0 0.0
  %2428 = vmatpush1.msra.mxu0 0.0
  %2429 = vmatprep.subr.mxu0 0.0
  %2430 = vmatpush1.msra.mxu0 0.0
  %2431 = vmatprep.mubr.f32.mxu0 0.0
  %2432 = vmatmul.mubr.f32.gmra.mrb[0].mxu0 %v2320
  %v2433 = vpop.f32.mrb[0].mxu0
  %v2434 = vadd.f32 0.0, %v2433
  %v2435 = vpop.f32.mrb[0].mxu0
  %2436 = vmatprep.mubr.f32.mxu0 0.0
  %2437 = vmatmul.mubr.f32.gmra.mrb[0].mxu0 %v2323
  %v2438 = vpop.f32.mrb[0].mxu0
  %v2439 = vadd.f32 0.0, %v2438
  %v2440 = vpop.f32.mrb[0].mxu0
  %2441 = vmatprep.mubr.f32.mxu0 0.0
  %2442 = vmatmul.mubr.f32.gmra.mrb[0].mxu0 %v2326
  %v2443 = vpop.f32.mrb[0].mxu0
  %v2444 = vadd.f32 0.0, %v2443
  %v2445 = vpop.f32.mrb[0].mxu0
  %2446 = vmatprep.mubr.f32.mxu0 0.0
  %2447 = vmatmul.mubr.f32.gmra.mrb[0].mxu0 %v2329
  %v2448 = vpop.f32.mrb[0].mxu0
  %v2449 = vadd.f32 0.0, %v2448
  %v2450 = vpop.f32.mrb[0].mxu0
  %2451 = vmatprep.mubr.f32.mxu0 0.0
  %2452 = vmatmul.mubr.f32.gmra.mrb[0].mxu0 %v2332
  %v2453 = vpop.f32.mrb[0].mxu0
  %v2454 = vadd.f32 0.0, %v2453
  %v2455 = vpop.f32.mrb[0].mxu0
  %2456 = vmatprep.mubr.f32.mxu0 0.0
  %2457 = vmatmul.mubr.f32.gmra.mrb[0].mxu0 %v2335
  %v2458 = vpop.f32.mrb[0].mxu0
  %v2459 = vadd.f32 0.0, %v2458
  %v2460 = vpop.f32.mrb[0].mxu0
  %2461 = vmatprep.mubr.f32.mxu0 0.0
  %2462 = vmatmul.mubr.f32.gmra.mrb[0].mxu0 %v2338
  %v2463 = vpop.f32.mrb[0].mxu0
  %v2464 = vadd.f32 0.0, %v2463
  %v2465 = vpop.f32.mrb[0].mxu0
  %2466 = vmatprep.mubr.f32.mxu0 0.0
  %2467 = vmatmul.mubr.f32.gmra.mrb[0].mxu0 %v2341
  %v2468 = vpop.f32.mrb[0].mxu0
  %v2469 = vadd.f32 0.0, %v2468
  %v2470 = vpop.f32.mrb[0].mxu0
  %2471 = vmatprep.mubr.f32.mxu0 0.0
  %2472 = vmatmul.mubr.f32.gmra.mrb[0].mxu0 %v2344
  %v2473 = vpop.f32.mrb[0].mxu0
  %v2474 = vadd.f32 0.0, %v2473
  %v2475 = vpop.f32.mrb[0].mxu0
  %2476 = vmatprep.mubr.f32.mxu0 0.0
  %2477 = vmatmul.mubr.f32.gmra.mrb[0].mxu0 %v2347
  %v2478 = vpop.f32.mrb[0].mxu0
  %v2479 = vadd.f32 0.0, %v2478
  %v2480 = vpop.f32.mrb[0].mxu0
  %2481 = vmatprep.mubr.f32.mxu0 0.0
  %2482 = vmatmul.mubr.f32.gmra.mrb[0].mxu0 %v2350
  %v2483 = vpop.f32.mrb[0].mxu0
  %v2484 = vadd.f32 0.0, %v2483
  %v2485 = vpop.f32.mrb[0].mxu0
  %2486 = vmatprep.mubr.f32.mxu0 0.0
  %2487 = vmatmul.mubr.f32.gmra.mrb[0].mxu0 %v2353
  %v2488 = vpop.f32.mrb[0].mxu0
  %v2489 = vadd.f32 0.0, %v2488
  %v2490 = vpop.f32.mrb[0].mxu0
  %2491 = vmatprep.mubr.f32.mxu0 0.0
  %2492 = vmatmul.mubr.f32.gmra.mrb[0].mxu0 %v2356
  %v2493 = vpop.f32.mrb[0].mxu0
  %v2494 = vadd.f32 0.0, %v2493
  %v2495 = vpop.f32.mrb[0].mxu0
  %2496 = vmatprep.mubr.f32.mxu0 0.0
  %2497 = vmatmul.mubr.f32.gmra.mrb[0].mxu0 %v2359
  %v2498 = vpop.f32.mrb[0].mxu0
  %v2499 = vadd.f32 0.0, %v2498
  %v2500 = vpop.f32.mrb[0].mxu0
  %2501 = vmatprep.mubr.f32.mxu0 0.0
  %2502 = vmatmul.mubr.f32.gmra.mrb[0].mxu0 %v2362
  %v2503 = vpop.f32.mrb[0].mxu0
  %v2504 = vadd.f32 0.0, %v2503
  %v2505 = vpop.f32.mrb[0].mxu0
  %2506 = vmatprep.mubr.f32.mxu0 0.0
  %2507 = vmatmul.mubr.f32.gmra.mrb[0].mxu0 %v2365
  %v2508 = vpop.f32.mrb[0].mxu0
  %v2509 = vadd.f32 0.0, %v2508
  %v2510 = vpop.f32.mrb[0].mxu0
  %2511 = vdwg.mxu0
  %v2513 = vsel %vm1098, %v2303, 0
  %v2516 = vsel %vm1098, %v2304, 0
  %v2519 = vsel %vm1098, %v2305, 0
  %v2522 = vsel %vm1098, %v2306, 0
  %v2525 = vsel %vm1098, %v2307, 0
  %v2528 = vsel %vm1098, %v2308, 0
  %v2531 = vsel %vm1098, %v2309, 0
  %v2534 = vsel %vm1098, %v2310, 0
  %v2537 = vsel %vm1098, %v2311, 0
  %v2540 = vsel %vm1098, %v2312, 0
  %v2543 = vsel %vm1098, %v2313, 0
  %v2546 = vsel %vm1098, %v2314, 0
  %v2549 = vsel %vm1098, %v2315, 0
  %v2552 = vsel %vm1098, %v2316, 0
  %v2555 = vsel %vm1098, %v2317, 0
  %v2558 = vsel %vm1098, %v2318, 0
  %2560 = vmatprep.subr.mxu0 0.0
  %2561 = vmatpush1.msra.mxu0 %v2133
  %2562 = vmatprep.subr.mxu0 0.0
  %2563 = vmatpush1.msra.mxu0 %v2134
  %2564 = vmatprep.subr.mxu0 0.0
  %2565 = vmatpush1.msra.mxu0 %v2135
  %2566 = vmatprep.subr.mxu0 0.0
  %2567 = vmatpush1.msra.mxu0 %v2136
  %2568 = vmatprep.subr.mxu0 0.0
  %2569 = vmatpush1.msra.mxu0 0.0
  %2570 = vmatprep.subr.mxu0 0.0
  %2571 = vmatpush1.msra.mxu0 0.0
  %2572 = vmatprep.subr.mxu0 0.0
  %2573 = vmatpush1.msra.mxu0 0.0
  %2574 = vmatprep.subr.mxu0 0.0
  %2575 = vmatpush1.msra.mxu0 0.0
  %2576 = vmatprep.subr.mxu0 0.0
  %2577 = vmatpush1.msra.mxu0 0.0
  %2578 = vmatprep.subr.mxu0 0.0
  %2579 = vmatpush1.msra.mxu0 0.0
  %2580 = vmatprep.subr.mxu0 0.0
  %2581 = vmatpush1.msra.mxu0 0.0
  %2582 = vmatprep.subr.mxu0 0.0
  %2583 = vmatpush1.msra.mxu0 0.0
  %2584 = vmatprep.subr.mxu0 0.0
  %2585 = vmatpush1.msra.mxu0 0.0
  %2586 = vmatprep.subr.mxu0 0.0
  %2587 = vmatpush1.msra.mxu0 0.0
  %2588 = vmatprep.subr.mxu0 0.0
  %2589 = vmatpush1.msra.mxu0 0.0
  %2590 = vmatprep.subr.mxu0 0.0
  %2591 = vmatpush1.msra.mxu0 0.0
  %2592 = vmatprep.subr.mxu0 0.0
  %2593 = vmatpush1.msra.mxu0 0.0
  %2594 = vmatprep.subr.mxu0 0.0
  %2595 = vmatpush1.msra.mxu0 0.0
  %2596 = vmatprep.subr.mxu0 0.0
  %2597 = vmatpush1.msra.mxu0 0.0
  %2598 = vmatprep.subr.mxu0 0.0
  %2599 = vmatpush1.msra.mxu0 0.0
  %2600 = vmatprep.subr.mxu0 0.0
  %2601 = vmatpush1.msra.mxu0 0.0
  %2602 = vmatprep.subr.mxu0 0.0
  %2603 = vmatpush1.msra.mxu0 0.0
  %2604 = vmatprep.subr.mxu0 0.0
  %2605 = vmatpush1.msra.mxu0 0.0
  %2606 = vmatprep.subr.mxu0 0.0
  %2607 = vmatpush1.msra.mxu0 0.0
  %2608 = vmatprep.subr.mxu0 0.0
  %2609 = vmatpush1.msra.mxu0 0.0
  %2610 = vmatprep.subr.mxu0 0.0
  %2611 = vmatpush1.msra.mxu0 0.0
  %2612 = vmatprep.subr.mxu0 0.0
  %2613 = vmatpush1.msra.mxu0 0.0
  %2614 = vmatprep.subr.mxu0 0.0
  %2615 = vmatpush1.msra.mxu0 0.0
  %2616 = vmatprep.subr.mxu0 0.0
  %2617 = vmatpush1.msra.mxu0 0.0
  %2618 = vmatprep.subr.mxu0 0.0
  %2619 = vmatpush1.msra.mxu0 0.0
  %2620 = vmatprep.subr.mxu0 0.0
  %2621 = vmatpush1.msra.mxu0 0.0
  %2622 = vmatprep.subr.mxu0 0.0
  %2623 = vmatpush1.msra.mxu0 0.0
  %2624 = vmatprep.mubr.f32.mxu0 0.0
  %2625 = vmatmul.mubr.f32.gmra.mrb[0].mxu0 %v2513
  %v2626 = vpop.f32.mrb[0].mxu0
  %v2627 = vadd.f32 %v2434, %v2626
  %v2628 = vpop.f32.mrb[0].mxu0
  %2629 = vmatprep.mubr.f32.mxu0 0.0
  %2630 = vmatmul.mubr.f32.gmra.mrb[0].mxu0 %v2516
  %v2631 = vpop.f32.mrb[0].mxu0
  %v2632 = vadd.f32 %v2439, %v2631
  %v2633 = vpop.f32.mrb[0].mxu0
  %2634 = vmatprep.mubr.f32.mxu0 0.0
  %2635 = vmatmul.mubr.f32.gmra.mrb[0].mxu0 %v2519
  %v2636 = vpop.f32.mrb[0].mxu0
  %v2637 = vadd.f32 %v2444, %v2636
  %v2638 = vpop.f32.mrb[0].mxu0
  %2639 = vmatprep.mubr.f32.mxu0 0.0
  %2640 = vmatmul.mubr.f32.gmra.mrb[0].mxu0 %v2522
  %v2641 = vpop.f32.mrb[0].mxu0
  %v2642 = vadd.f32 %v2449, %v2641
  %v2643 = vpop.f32.mrb[0].mxu0
  %2644 = vmatprep.mubr.f32.mxu0 0.0
  %2645 = vmatmul.mubr.f32.gmra.mrb[0].mxu0 %v2525
  %v2646 = vpop.f32.mrb[0].mxu0
  %v2647 = vadd.f32 %v2454, %v2646
  %v2648 = vpop.f32.mrb[0].mxu0
  %2649 = vmatprep.mubr.f32.mxu0 0.0
  %2650 = vmatmul.mubr.f32.gmra.mrb[0].mxu0 %v2528
  %v2651 = vpop.f32.mrb[0].mxu0
  %v2652 = vadd.f32 %v2459, %v2651
  %v2653 = vpop.f32.mrb[0].mxu0
  %2654 = vmatprep.mubr.f32.mxu0 0.0
  %2655 = vmatmul.mubr.f32.gmra.mrb[0].mxu0 %v2531
  %v2656 = vpop.f32.mrb[0].mxu0
  %v2657 = vadd.f32 %v2464, %v2656
  %v2658 = vpop.f32.mrb[0].mxu0
  %2659 = vmatprep.mubr.f32.mxu0 0.0
  %2660 = vmatmul.mubr.f32.gmra.mrb[0].mxu0 %v2534
  %v2661 = vpop.f32.mrb[0].mxu0
  %v2662 = vadd.f32 %v2469, %v2661
  %v2663 = vpop.f32.mrb[0].mxu0
  %2664 = vmatprep.mubr.f32.mxu0 0.0
  %2665 = vmatmul.mubr.f32.gmra.mrb[0].mxu0 %v2537
  %v2666 = vpop.f32.mrb[0].mxu0
  %v2667 = vadd.f32 %v2474, %v2666
  %v2668 = vpop.f32.mrb[0].mxu0
  %2669 = vmatprep.mubr.f32.mxu0 0.0
  %2670 = vmatmul.mubr.f32.gmra.mrb[0].mxu0 %v2540
  %v2671 = vpop.f32.mrb[0].mxu0
  %v2672 = vadd.f32 %v2479, %v2671
  %v2673 = vpop.f32.mrb[0].mxu0
  %2674 = vmatprep.mubr.f32.mxu0 0.0
  %2675 = vmatmul.mubr.f32.gmra.mrb[0].mxu0 %v2543
  %v2676 = vpop.f32.mrb[0].mxu0
  %v2677 = vadd.f32 %v2484, %v2676
  %v2678 = vpop.f32.mrb[0].mxu0
  %2679 = vmatprep.mubr.f32.mxu0 0.0
  %2680 = vmatmul.mubr.f32.gmra.mrb[0].mxu0 %v2546
  %v2681 = vpop.f32.mrb[0].mxu0
  %v2682 = vadd.f32 %v2489, %v2681
  %v2683 = vpop.f32.mrb[0].mxu0
  %2684 = vmatprep.mubr.f32.mxu0 0.0
  %2685 = vmatmul.mubr.f32.gmra.mrb[0].mxu0 %v2549
  %v2686 = vpop.f32.mrb[0].mxu0
  %v2687 = vadd.f32 %v2494, %v2686
  %v2688 = vpop.f32.mrb[0].mxu0
  %2689 = vmatprep.mubr.f32.mxu0 0.0
  %2690 = vmatmul.mubr.f32.gmra.mrb[0].mxu0 %v2552
  %v2691 = vpop.f32.mrb[0].mxu0
  %v2692 = vadd.f32 %v2499, %v2691
  %v2693 = vpop.f32.mrb[0].mxu0
  %2694 = vmatprep.mubr.f32.mxu0 0.0
  %2695 = vmatmul.mubr.f32.gmra.mrb[0].mxu0 %v2555
  %v2696 = vpop.f32.mrb[0].mxu0
  %v2697 = vadd.f32 %v2504, %v2696
  %v2698 = vpop.f32.mrb[0].mxu0
  %2699 = vmatprep.mubr.f32.mxu0 0.0
  %2700 = vmatmul.mubr.f32.gmra.mrb[0].mxu0 %v2558
  %v2701 = vpop.f32.mrb[0].mxu0
  %v2702 = vadd.f32 %v2509, %v2701
  %v2703 = vpop.f32.mrb[0].mxu0
  %2704 = vdwg.mxu0
  %v2706 = vlaneseq
  %v2707 = vshrl.u32 %v2706, 7
  %v2708 = vsub.s32 0, %v2707
  %v2709 = vrot.slane %v2141, %v2708
  %v2711 = vadd.f32 %v2627, %v2709
  %v2712 = vadd.f32 %v2632, %v2709
  %v2713 = vadd.f32 %v2637, %v2709
  %v2714 = vadd.f32 %v2642, %v2709
  %v2715 = vadd.f32 %v2647, %v2709
  %v2716 = vadd.f32 %v2652, %v2709
  %v2717 = vadd.f32 %v2657, %v2709
  %v2718 = vadd.f32 %v2662, %v2709
  %v2719 = vadd.f32 %v2667, %v2709
  %v2720 = vadd.f32 %v2672, %v2709
  %v2721 = vadd.f32 %v2677, %v2709
  %v2722 = vadd.f32 %v2682, %v2709
  %v2723 = vadd.f32 %v2687, %v2709
  %v2724 = vadd.f32 %v2692, %v2709
  %v2725 = vadd.f32 %v2697, %v2709
  %v2726 = vadd.f32 %v2702, %v2709
  %vm2727 = vcmask 23552
  %2728 = vst.msk [vmem:[%s16] sm:$0xff] %vm2727, %v2711
  %2729 = vst.msk [vmem:[%s16 + $0x8] sm:$0xff] %vm2727, %v2712
  %2730 = vst.msk [vmem:[%s16 + $0x10] sm:$0xff] %vm2727, %v2713
  %2731 = vst.msk [vmem:[%s16 + $0x18] sm:$0xff] %vm2727, %v2714
  %2732 = vst.msk [vmem:[%s16 + $0x20] sm:$0xff] %vm2727, %v2715
  %2733 = vst.msk [vmem:[%s16 + $0x28] sm:$0xff] %vm2727, %v2716
  %2734 = vst.msk [vmem:[%s16 + $0x30] sm:$0xff] %vm2727, %v2717
  %2735 = vst.msk [vmem:[%s16 + $0x38] sm:$0xff] %vm2727, %v2718
  %2736 = vst.msk [vmem:[%s16 + $0x40] sm:$0xff] %vm2727, %v2719
  %2737 = vst.msk [vmem:[%s16 + $0x48] sm:$0xff] %vm2727, %v2720
  %2738 = vst.msk [vmem:[%s16 + $0x50] sm:$0xff] %vm2727, %v2721
  %2739 = vst.msk [vmem:[%s16 + $0x58] sm:$0xff] %vm2727, %v2722
  %2740 = vst.msk [vmem:[%s16 + $0x60] sm:$0xff] %vm2727, %v2723
  %2741 = vst.msk [vmem:[%s16 + $0x68] sm:$0xff] %vm2727, %v2724
  %2742 = vst.msk [vmem:[%s16 + $0x70] sm:$0xff] %vm2727, %v2725
  %2743 = vst.msk [vmem:[%s16 + $0x78] sm:$0xff] %vm2727, %v2726
  // Predicated region
  $region66: #{policy_graph_conv_net.1} parent=0 // pred_check
    _
  $region67: #{policy_graph_conv_net.1} parent=0 // pred_check_branch
    %2745 = sbr.rel (0) target = $region69
  $region68: #{policy_graph_conv_net.1} parent=0 // pred_region
    _
  $region69: #{policy_graph_conv_net.1} parent=0 // pred_fallthru
    _
  // Predicated region
  $region70: #{policy_graph_conv_net.1} parent=0 // pred_check
    _
  $region71: #{policy_graph_conv_net.1} parent=0 // pred_check_branch
    %2747 = sbr.rel (0) target = $region73
  $region72: #{policy_graph_conv_net.1} parent=0 // pred_region
    _
  $region73: #{policy_graph_conv_net.1} parent=0 // pred_fallthru
    _

</llo_original>
